<compile_context>
chip_gen: v7x
topology: tpu7x:2x2x1
jax: 0.10.0
libtpu: 0.0.40
codegen_flags: <defaults>
</compile_context>

<pallas_src>
import jax
import jax.numpy as jnp
from jax.experimental import pallas as pl
from jax.experimental.pallas import tpu as pltpu


def _banded_conv_weight(w_oihw, width, dtype):
    """Fold the kx taps of a 3x3 / padding=1 conv into a block-banded matrix.

    Returns (KH, width*Cin, width*Cout):  out[h, ow*Cout+co] =
      sum_ky  dot(x_row[h+ky] (width*Cin,),  band[ky])  reproduces the conv;
    out-of-range kx taps are simply absent from the band (== zero padding in W).
    """
    Cout, Cin, KH, KW = w_oihw.shape
    w_hwio = jnp.transpose(w_oihw, (2, 3, 1, 0)).astype(jnp.float32)  # (ky,kx,Cin,Cout)
    kx = jnp.arange(KW)[:, None, None]
    rb = jnp.arange(width)[None, :, None]   # input width position
    ow = jnp.arange(width)[None, None, :]   # output width position
    sel = (rb == ow + kx - (KW // 2)).astype(jnp.float32)             # (KW, W, W)
    band = jnp.einsum("kro,ykic->yrioc", sel, w_hwio)                 # (ky, rb, Cin, ow, Cout)
    return band.reshape(KH, width * Cin, width * Cout).astype(dtype)


def _pool_selectors(width, cout, dtype):
    """0/1 matrices picking the even / odd width groups of a (.., W*Cout) row.

    pooled = max(row @ sel[0], row @ sel[1]) implements the stride-2 W pooling
    exactly (1.0*x + 0.0*y is exact), with no lane-splitting reshapes.
    """
    p = jnp.arange(width * cout)[:, None]
    q = jnp.arange((width // 2) * cout)[None, :]
    qg, qc = q // cout, q % cout
    even = (p == 2 * qg * cout + qc).astype(dtype)
    odd = (p == (2 * qg + 1) * cout + qc).astype(dtype)
    return jnp.stack([even, odd], axis=0)   # (2, W*Cout, (W//2)*Cout)


def _make_basic_block_kernel(H, W, Cin, Chid, Cout):
    def kernel(xp_ref, w1_ref, b1_ref, w2_ref, b2_ref, sel_ref, out_ref, h1p_ref):
        # xp_ref : (1, H+2, W*Cin)            bf16, H-padded input (W halo is in the band)
        # w1_ref : (3, W*Cin,  W*Chid)        bf16 banded conv1 weights (one slab per ky)
        # b1_ref : (1, W*Chid)                f32
        # w2_ref : (3, W*Chid, W*Cout)        bf16 banded conv2 weights
        # b2_ref : (1, W*Cout)                f32
        # sel_ref: (2, W*Cout, (W//2)*Cout)   f32 0/1 W-pool selectors
        # out_ref: (1, H//2, (W//2)*Cout)     f32
        # h1p_ref: (H+2, W*Chid)              bf16 scratch (hidden acts + 1-row H halo)

        # ---- conv1: 3 banded bf16 matmuls (K = W*Cin), f32 accumulate, bias, ReLU ----
        acc1 = jnp.dot(xp_ref[0, 0:H, :], w1_ref[0], preferred_element_type=jnp.float32)
        acc1 = acc1 + jnp.dot(xp_ref[0, 1:H + 1, :], w1_ref[1],
                              preferred_element_type=jnp.float32)
        acc1 = acc1 + jnp.dot(xp_ref[0, 2:H + 2, :], w1_ref[2],
                              preferred_element_type=jnp.float32)
        h1 = jnp.maximum(acc1 + b1_ref[...], 0.0)               # (H, W*Chid) f32

        # ---- stash hidden acts (bf16); zero only the two halo rows.  Every row of
        # the scratch is rewritten each grid step, so nothing stale carries over. ----
        h1p_ref[0:1, :] = jnp.zeros((1, W * Chid), h1p_ref.dtype)
        h1p_ref[H + 1:H + 2, :] = jnp.zeros((1, W * Chid), h1p_ref.dtype)
        h1p_ref[1:H + 1, :] = h1.astype(h1p_ref.dtype)

        # ---- conv2: 3 banded bf16 matmuls (K = W*Chid), bias, ReLU ----
        acc2 = jnp.dot(h1p_ref[0:H, :], w2_ref[0], preferred_element_type=jnp.float32)
        acc2 = acc2 + jnp.dot(h1p_ref[1:H + 1, :], w2_ref[1],
                              preferred_element_type=jnp.float32)
        acc2 = acc2 + jnp.dot(h1p_ref[2:H + 2, :], w2_ref[2],
                              preferred_element_type=jnp.float32)
        h2 = jnp.maximum(acc2 + b2_ref[...], 0.0)               # (H, W*Cout) f32

        # ---- MaxPool 2x2 / stride 2, fully vectorized, single bulk store ----
        h2r = h2.reshape(H // 2, 2, W * Cout)                   # minor dim unchanged
        ph = jnp.maximum(h2r[:, 0, :], h2r[:, 1, :])            # pool over H
        pooled = jnp.maximum(                                   # pool over W (exact 0/1 matmuls)
            jnp.dot(ph, sel_ref[0], preferred_element_type=jnp.float32),
            jnp.dot(ph, sel_ref[1], preferred_element_type=jnp.float32))
        out_ref[0] = pooled                                     # one (H//2, (W//2)*Cout) store

    return kernel


@jax.jit
def basic_block_forward(x_nchw, w1, b1, w2, b2):
    """x_nchw: (N, Cin, H, W); torch-layout weights w1:(Chid,Cin,3,3), w2:(Cout,Chid,3,3)."""
    N, Cin, H, W = x_nchw.shape
    Chid = w1.shape[0]
    Cout = w2.shape[0]

    # NCHW -> NHWC, pad H only (W halo lives in the banded weights), flatten (W, C).
    x_nhwc = jnp.transpose(x_nchw, (0, 2, 3, 1)).astype(jnp.float32)
    xp = jnp.pad(x_nhwc, ((0, 0), (1, 1), (0, 0), (0, 0)))
    xp = xp.reshape(N, H + 2, W * Cin).astype(jnp.bfloat16)

    w1b = _banded_conv_weight(w1, W, jnp.bfloat16)              # (3, W*Cin,  W*Chid)
    w2b = _banded_conv_weight(w2, W, jnp.bfloat16)              # (3, W*Chid, W*Cout)
    b1r = jnp.tile(b1.astype(jnp.float32), W).reshape(1, W * Chid)
    b2r = jnp.tile(b2.astype(jnp.float32), W).reshape(1, W * Cout)
    sel = _pool_selectors(W, Cout, jnp.float32)                 # (2, W*Cout, (W//2)*Cout)

    kernel = _make_basic_block_kernel(H, W, Cin, Chid, Cout)
    out = pl.pallas_call(
        kernel,
        out_shape=jax.ShapeDtypeStruct((N, H // 2, (W // 2) * Cout), jnp.float32),
        grid=(N,),
        in_specs=[
            pl.BlockSpec((1, H + 2, W * Cin), lambda n: (n, 0, 0)),
            pl.BlockSpec((3, W * Cin, W * Chid), lambda n: (0, 0, 0)),
            pl.BlockSpec((1, W * Chid), lambda n: (0, 0)),
            pl.BlockSpec((3, W * Chid, W * Cout), lambda n: (0, 0, 0)),
            pl.BlockSpec((1, W * Cout), lambda n: (0, 0)),
            pl.BlockSpec((2, W * Cout, (W // 2) * Cout), lambda n: (0, 0, 0)),
        ],
        out_specs=pl.BlockSpec((1, H // 2, (W // 2) * Cout), lambda n: (n, 0, 0)),
        scratch_shapes=[pltpu.VMEM((H + 2, W * Chid), jnp.bfloat16)],
        compiler_params=pltpu.CompilerParams(
            dimension_semantics=("parallel",)),   # batch axis: pipelined + 2-TC on v7x
    )(xp, w1b, b1r, w2b, b2r, sel)

    out = out.reshape(N, H // 2, W // 2, Cout)
    return jnp.transpose(out, (0, 3, 1, 2))                     # back to NCHW


def reference_forward(x, w1, b1, w2, b2, quantize_like_kernel=False):
    """Plain XLA reference of the nn.Module forward (optionally matching the
    kernel's bf16 quantization points so the comparison isolates the math)."""
    dn = ("NCHW", "OIHW", "NCHW")
    f32 = jnp.float32
    if quantize_like_kernel:
        x = x.astype(jnp.bfloat16).astype(f32)
        w1 = w1.astype(jnp.bfloat16).astype(f32)
        w2 = w2.astype(jnp.bfloat16).astype(f32)
    y = jax.lax.conv_general_dilated(x, w1, (1, 1), "SAME", dimension_numbers=dn,
                                     precision=jax.lax.Precision.HIGHEST)
    y = jax.nn.relu(y + b1[None, :, None, None])
    if quantize_like_kernel:
        y = y.astype(jnp.bfloat16).astype(f32)
    y = jax.lax.conv_general_dilated(y, w2, (1, 1), "SAME", dimension_numbers=dn,
                                     precision=jax.lax.Precision.HIGHEST)
    y = jax.nn.relu(y + b2[None, :, None, None])
    y = jax.lax.reduce_window(y, -jnp.inf, jax.lax.max,
                              (1, 1, 2, 2), (1, 1, 2, 2), "VALID")
    return y


if __name__ == "__main__":
    # BasicBlock(in_channels=4, out_channels=8, hidden_dim=8); x: (2, 4, 16, 16)
    N, Cin, H, W = 2, 4, 16, 16
    Chid, Cout = 8, 8

    key = jax.random.PRNGKey(0)
    kx_, kw1, kb1, kw2, kb2 = jax.random.split(key, 5)
    x = jax.random.normal(kx_, (N, Cin, H, W), jnp.float32)
    w1 = jax.random.normal(kw1, (Chid, Cin, 3, 3), jnp.float32) * 0.1
    b1 = jax.random.normal(kb1, (Chid,), jnp.float32) * 0.1
    w2 = jax.random.normal(kw2, (Cout, Chid, 3, 3), jnp.float32) * 0.1
    b2 = jax.random.normal(kb2, (Cout,), jnp.float32) * 0.1

    out = basic_block_forward(x, w1, b1, w2, b2)
    out = jax.block_until_ready(out)

    # Kernel feeds the MXU bf16 (per perf review), so compare against a reference
    # with matching quantization points; tolerance is bf16-level.
    ref = reference_forward(x, w1, b1, w2, b2, quantize_like_kernel=True)
    assert out.shape == (N, Cout, H // 2, W // 2), out.shape
    max_err = float(jnp.max(jnp.abs(out - ref)))
    assert jnp.allclose(out, ref, rtol=2e-2, atol=2e-2), max_err

    print("KERNEL_OK")
</pallas_src>

<mosaic_0001>
module attributes {stable_mosaic.version = 11 : i64} {
  func.func @kernel(%arg0: i32, %arg1: memref<1x18x64xbf16, #tpu.memory_space<vmem>>, %arg2: memref<3x64x128xbf16, #tpu.memory_space<vmem>>, %arg3: memref<1x128xf32, #tpu.memory_space<vmem>>, %arg4: memref<3x128x128xbf16, #tpu.memory_space<vmem>>, %arg5: memref<1x128xf32, #tpu.memory_space<vmem>>, %arg6: memref<2x128x64xf32, #tpu.memory_space<vmem>>, %arg7: memref<1x8x64xf32, #tpu.memory_space<vmem>>, %arg8: memref<18x128xbf16, #tpu.memory_space<vmem>>) attributes {dimension_semantics = [#tpu.dimension_semantics<parallel>], iteration_bounds = array<i64: 2>, scalar_prefetch = 0 : i64, scratch_operands = 1 : i64, tpu.core_type = #tpu.core_type<tc>, window_params = [{transform_indices = @transform_0, window_bounds = array<i64: 1, 18, 64>}, {pipeline_mode = #tpu.pipeline_mode<synchronous>, transform_indices = @transform_1, window_bounds = array<i64: 3, 64, 128>}, {pipeline_mode = #tpu.pipeline_mode<synchronous>, transform_indices = @transform_2, window_bounds = array<i64: 1, 128>}, {pipeline_mode = #tpu.pipeline_mode<synchronous>, transform_indices = @transform_3, window_bounds = array<i64: 3, 128, 128>}, {pipeline_mode = #tpu.pipeline_mode<synchronous>, transform_indices = @transform_4, window_bounds = array<i64: 1, 128>}, {pipeline_mode = #tpu.pipeline_mode<synchronous>, transform_indices = @transform_5, window_bounds = array<i64: 2, 128, 64>}, {transform_indices = @transform_6, window_bounds = array<i64: 1, 8, 64>}]} {
    %c0 = arith.constant 0 : index
    %c0_0 = arith.constant 0 : index
    %c0_1 = arith.constant 0 : index
    %0 = vector.load %arg1[%c0, %c0_0, %c0_1] : memref<1x18x64xbf16, #tpu.memory_space<vmem>>, vector<1x16x64xbf16>
    %1 = vector.shape_cast %0 : vector<1x16x64xbf16> to vector<16x64xbf16>
    %c0_2 = arith.constant 0 : index
    %c0_3 = arith.constant 0 : index
    %c0_4 = arith.constant 0 : index
    %2 = vector.load %arg2[%c0_2, %c0_3, %c0_4] : memref<3x64x128xbf16, #tpu.memory_space<vmem>>, vector<1x64x128xbf16>
    %3 = vector.shape_cast %2 : vector<1x64x128xbf16> to vector<64x128xbf16>
    %cst = arith.constant dense<0.000000e+00> : vector<16x128xf32>
    %4 = tpu.matmul %1, %3, %cst {dimension_numbers = #tpu.dot_dimension_numbers<[1], [0], [0], [1], [0, 0, 1, 1], [], []>} : vector<16x64xbf16>, vector<64x128xbf16>, vector<16x128xf32> -> vector<16x128xf32>
    %c0_5 = arith.constant 0 : index
    %c1 = arith.constant 1 : index
    %c0_6 = arith.constant 0 : index
    %5 = vector.load %arg1[%c0_5, %c1, %c0_6] : memref<1x18x64xbf16, #tpu.memory_space<vmem>>, vector<1x16x64xbf16>
    %6 = vector.shape_cast %5 : vector<1x16x64xbf16> to vector<16x64xbf16>
    %c1_7 = arith.constant 1 : index
    %c0_8 = arith.constant 0 : index
    %c0_9 = arith.constant 0 : index
    %7 = vector.load %arg2[%c1_7, %c0_8, %c0_9] : memref<3x64x128xbf16, #tpu.memory_space<vmem>>, vector<1x64x128xbf16>
    %8 = vector.shape_cast %7 : vector<1x64x128xbf16> to vector<64x128xbf16>
    %cst_10 = arith.constant dense<0.000000e+00> : vector<16x128xf32>
    %9 = tpu.matmul %6, %8, %cst_10 {dimension_numbers = #tpu.dot_dimension_numbers<[1], [0], [0], [1], [0, 0, 1, 1], [], []>} : vector<16x64xbf16>, vector<64x128xbf16>, vector<16x128xf32> -> vector<16x128xf32>
    %10 = arith.addf %4, %9 : vector<16x128xf32>
    %c0_11 = arith.constant 0 : index
    %c2 = arith.constant 2 : index
    %c0_12 = arith.constant 0 : index
    %11 = vector.load %arg1[%c0_11, %c2, %c0_12] : memref<1x18x64xbf16, #tpu.memory_space<vmem>>, vector<1x16x64xbf16>
    %12 = vector.shape_cast %11 : vector<1x16x64xbf16> to vector<16x64xbf16>
    %c2_13 = arith.constant 2 : index
    %c0_14 = arith.constant 0 : index
    %c0_15 = arith.constant 0 : index
    %13 = vector.load %arg2[%c2_13, %c0_14, %c0_15] : memref<3x64x128xbf16, #tpu.memory_space<vmem>>, vector<1x64x128xbf16>
    %14 = vector.shape_cast %13 : vector<1x64x128xbf16> to vector<64x128xbf16>
    %cst_16 = arith.constant dense<0.000000e+00> : vector<16x128xf32>
    %15 = tpu.matmul %12, %14, %cst_16 {dimension_numbers = #tpu.dot_dimension_numbers<[1], [0], [0], [1], [0, 0, 1, 1], [], []>} : vector<16x64xbf16>, vector<64x128xbf16>, vector<16x128xf32> -> vector<16x128xf32>
    %16 = arith.addf %10, %15 : vector<16x128xf32>
    %c0_17 = arith.constant 0 : index
    %c0_18 = arith.constant 0 : index
    %17 = vector.load %arg3[%c0_17, %c0_18] : memref<1x128xf32, #tpu.memory_space<vmem>>, vector<1x128xf32>
    %18 = vector.broadcast %17 : vector<1x128xf32> to vector<16x128xf32>
    %19 = arith.addf %16, %18 : vector<16x128xf32>
    %cst_19 = arith.constant 0.000000e+00 : f32
    %20 = vector.broadcast %cst_19 : f32 to vector<16x128xf32>
    %21 = arith.maximumf %19, %20 : vector<16x128xf32>
    %cst_20 = arith.constant 0.000000e+00 : bf16
    %22 = vector.broadcast %cst_20 : bf16 to vector<1x128xbf16>
    %c0_21 = arith.constant 0 : index
    %c0_22 = arith.constant 0 : index
    %23 = vector.load %arg8[%c0_21, %c0_22] : memref<18x128xbf16, #tpu.memory_space<vmem>>, vector<1x128xbf16>
    tpu.vector_store %arg8[%c0_21, %c0_22], %22 {strides = array<i32>} : memref<18x128xbf16, #tpu.memory_space<vmem>>, vector<1x128xbf16>,
    %cst_23 = arith.constant 0.000000e+00 : bf16
    %24 = vector.broadcast %cst_23 : bf16 to vector<1x128xbf16>
    %c17 = arith.constant 17 : index
    %c0_24 = arith.constant 0 : index
    %25 = vector.load %arg8[%c17, %c0_24] : memref<18x128xbf16, #tpu.memory_space<vmem>>, vector<1x128xbf16>
    tpu.vector_store %arg8[%c17, %c0_24], %24 {strides = array<i32>} : memref<18x128xbf16, #tpu.memory_space<vmem>>, vector<1x128xbf16>,
    %26 = arith.truncf %21 : vector<16x128xf32> to vector<16x128xbf16>
    %c1_25 = arith.constant 1 : index
    %c0_26 = arith.constant 0 : index
    %27 = vector.load %arg8[%c1_25, %c0_26] : memref<18x128xbf16, #tpu.memory_space<vmem>>, vector<16x128xbf16>
    tpu.vector_store %arg8[%c1_25, %c0_26], %26 {strides = array<i32>} : memref<18x128xbf16, #tpu.memory_space<vmem>>, vector<16x128xbf16>,
    %c0_27 = arith.constant 0 : index
    %c0_28 = arith.constant 0 : index
    %28 = vector.load %arg8[%c0_27, %c0_28] : memref<18x128xbf16, #tpu.memory_space<vmem>>, vector<16x128xbf16>
    %c0_29 = arith.constant 0 : index
    %c0_30 = arith.constant 0 : index
    %c0_31 = arith.constant 0 : index
    %29 = vector.load %arg4[%c0_29, %c0_30, %c0_31] : memref<3x128x128xbf16, #tpu.memory_space<vmem>>, vector<1x128x128xbf16>
    %30 = vector.shape_cast %29 : vector<1x128x128xbf16> to vector<128x128xbf16>
    %cst_32 = arith.constant dense<0.000000e+00> : vector<16x128xf32>
    %31 = tpu.matmul %28, %30, %cst_32 {dimension_numbers = #tpu.dot_dimension_numbers<[1], [0], [0], [1], [0, 0, 1, 1], [], []>} : vector<16x128xbf16>, vector<128x128xbf16>, vector<16x128xf32> -> vector<16x128xf32>
    %c1_33 = arith.constant 1 : index
    %c0_34 = arith.constant 0 : index
    %32 = vector.load %arg8[%c1_33, %c0_34] : memref<18x128xbf16, #tpu.memory_space<vmem>>, vector<16x128xbf16>
    %c1_35 = arith.constant 1 : index
    %c0_36 = arith.constant 0 : index
    %c0_37 = arith.constant 0 : index
    %33 = vector.load %arg4[%c1_35, %c0_36, %c0_37] : memref<3x128x128xbf16, #tpu.memory_space<vmem>>, vector<1x128x128xbf16>
    %34 = vector.shape_cast %33 : vector<1x128x128xbf16> to vector<128x128xbf16>
    %cst_38 = arith.constant dense<0.000000e+00> : vector<16x128xf32>
    %35 = tpu.matmul %32, %34, %cst_38 {dimension_numbers = #tpu.dot_dimension_numbers<[1], [0], [0], [1], [0, 0, 1, 1], [], []>} : vector<16x128xbf16>, vector<128x128xbf16>, vector<16x128xf32> -> vector<16x128xf32>
    %36 = arith.addf %31, %35 : vector<16x128xf32>
    %c2_39 = arith.constant 2 : index
    %c0_40 = arith.constant 0 : index
    %37 = vector.load %arg8[%c2_39, %c0_40] : memref<18x128xbf16, #tpu.memory_space<vmem>>, vector<16x128xbf16>
    %c2_41 = arith.constant 2 : index
    %c0_42 = arith.constant 0 : index
    %c0_43 = arith.constant 0 : index
    %38 = vector.load %arg4[%c2_41, %c0_42, %c0_43] : memref<3x128x128xbf16, #tpu.memory_space<vmem>>, vector<1x128x128xbf16>
    %39 = vector.shape_cast %38 : vector<1x128x128xbf16> to vector<128x128xbf16>
    %cst_44 = arith.constant dense<0.000000e+00> : vector<16x128xf32>
    %40 = tpu.matmul %37, %39, %cst_44 {dimension_numbers = #tpu.dot_dimension_numbers<[1], [0], [0], [1], [0, 0, 1, 1], [], []>} : vector<16x128xbf16>, vector<128x128xbf16>, vector<16x128xf32> -> vector<16x128xf32>
    %41 = arith.addf %36, %40 : vector<16x128xf32>
    %c0_45 = arith.constant 0 : index
    %c0_46 = arith.constant 0 : index
    %42 = vector.load %arg5[%c0_45, %c0_46] : memref<1x128xf32, #tpu.memory_space<vmem>>, vector<1x128xf32>
    %43 = vector.broadcast %42 : vector<1x128xf32> to vector<16x128xf32>
    %44 = arith.addf %41, %43 : vector<16x128xf32>
    %cst_47 = arith.constant 0.000000e+00 : f32
    %45 = vector.broadcast %cst_47 : f32 to vector<16x128xf32>
    %46 = arith.maximumf %44, %45 : vector<16x128xf32>
    %47 = vector.shape_cast %46 : vector<16x128xf32> to vector<8x2x128xf32>
    %48 = vector.extract_strided_slice %47 {offsets = [0, 0, 0], sizes = [8, 1, 128], strides = [1, 1, 1]} : vector<8x2x128xf32> to vector<8x1x128xf32>
    %49 = vector.shape_cast %48 : vector<8x1x128xf32> to vector<8x128xf32>
    %50 = vector.extract_strided_slice %47 {offsets = [0, 1, 0], sizes = [8, 1, 128], strides = [1, 1, 1]} : vector<8x2x128xf32> to vector<8x1x128xf32>
    %51 = vector.shape_cast %50 : vector<8x1x128xf32> to vector<8x128xf32>
    %52 = arith.maximumf %49, %51 : vector<8x128xf32>
    %c0_48 = arith.constant 0 : index
    %c0_49 = arith.constant 0 : index
    %c0_50 = arith.constant 0 : index
    %53 = vector.load %arg6[%c0_48, %c0_49, %c0_50] : memref<2x128x64xf32, #tpu.memory_space<vmem>>, vector<1x128x64xf32>
    %54 = vector.shape_cast %53 : vector<1x128x64xf32> to vector<128x64xf32>
    %cst_51 = arith.constant dense<0.000000e+00> : vector<8x64xf32>
    %55 = tpu.matmul %52, %54, %cst_51 {dimension_numbers = #tpu.dot_dimension_numbers<[1], [0], [0], [1], [0, 0, 1, 1], [], []>} : vector<8x128xf32>, vector<128x64xf32>, vector<8x64xf32> -> vector<8x64xf32>
    %c1_52 = arith.constant 1 : index
    %c0_53 = arith.constant 0 : index
    %c0_54 = arith.constant 0 : index
    %56 = vector.load %arg6[%c1_52, %c0_53, %c0_54] : memref<2x128x64xf32, #tpu.memory_space<vmem>>, vector<1x128x64xf32>
    %57 = vector.shape_cast %56 : vector<1x128x64xf32> to vector<128x64xf32>
    %cst_55 = arith.constant dense<0.000000e+00> : vector<8x64xf32>
    %58 = tpu.matmul %52, %57, %cst_55 {dimension_numbers = #tpu.dot_dimension_numbers<[1], [0], [0], [1], [0, 0, 1, 1], [], []>} : vector<8x128xf32>, vector<128x64xf32>, vector<8x64xf32> -> vector<8x64xf32>
    %59 = arith.maximumf %55, %58 : vector<8x64xf32>
    %c0_56 = arith.constant 0 : index
    %c0_57 = arith.constant 0 : index
    %c0_58 = arith.constant 0 : index
    %60 = vector.load %arg7[%c0_56, %c0_57, %c0_58] : memref<1x8x64xf32, #tpu.memory_space<vmem>>, vector<1x8x64xf32>
    %61 = vector.shape_cast %60 : vector<1x8x64xf32> to vector<8x64xf32>
    %62 = vector.shape_cast %59 : vector<8x64xf32> to vector<1x8x64xf32>
    tpu.vector_store %arg7[%c0_56, %c0_57, %c0_58], %62 {strides = array<i32>} : memref<1x8x64xf32, #tpu.memory_space<vmem>>, vector<1x8x64xf32>,
    return
  }
  func.func @transform_0(%arg0: i32) -> (i32, i32, i32) {
    %c0_i32 = arith.constant 0 : i32
    %c0_i32_0 = arith.constant 0 : i32
    %c0_i32_1 = arith.constant 0 : i32
    return %arg0, %c0_i32, %c0_i32_0 : i32, i32, i32
  }
  func.func @transform_1(%arg0: i32) -> (i32, i32, i32) {
    %c0_i32 = arith.constant 0 : i32
    %c0_i32_0 = arith.constant 0 : i32
    %c0_i32_1 = arith.constant 0 : i32
    %c0_i32_2 = arith.constant 0 : i32
    return %c0_i32, %c0_i32_0, %c0_i32_1 : i32, i32, i32
  }
  func.func @transform_2(%arg0: i32) -> (i32, i32) {
    %c0_i32 = arith.constant 0 : i32
    %c0_i32_0 = arith.constant 0 : i32
    %c0_i32_1 = arith.constant 0 : i32
    return %c0_i32, %c0_i32_0 : i32, i32
  }
  func.func @transform_3(%arg0: i32) -> (i32, i32, i32) {
    %c0_i32 = arith.constant 0 : i32
    %c0_i32_0 = arith.constant 0 : i32
    %c0_i32_1 = arith.constant 0 : i32
    %c0_i32_2 = arith.constant 0 : i32
    return %c0_i32, %c0_i32_0, %c0_i32_1 : i32, i32, i32
  }
  func.func @transform_4(%arg0: i32) -> (i32, i32) {
    %c0_i32 = arith.constant 0 : i32
    %c0_i32_0 = arith.constant 0 : i32
    %c0_i32_1 = arith.constant 0 : i32
    return %c0_i32, %c0_i32_0 : i32, i32
  }
  func.func @transform_5(%arg0: i32) -> (i32, i32, i32) {
    %c0_i32 = arith.constant 0 : i32
    %c0_i32_0 = arith.constant 0 : i32
    %c0_i32_1 = arith.constant 0 : i32
    %c0_i32_2 = arith.constant 0 : i32
    return %c0_i32, %c0_i32_0, %c0_i32_1 : i32, i32, i32
  }
  func.func @transform_6(%arg0: i32) -> (i32, i32, i32) {
    %c0_i32 = arith.constant 0 : i32
    %c0_i32_0 = arith.constant 0 : i32
    %c0_i32_1 = arith.constant 0 : i32
    return %arg0, %c0_i32, %c0_i32_0 : i32, i32, i32
  }
}

</mosaic_0001>

<llo_original>
// kernel: tile.13
$region0: #{tile.13}
  #allocation0 [shape = 's32[1]{0}', space=sflag, size = 0x4, scoped, tag = 'scoped memory for tile.13']
  %s0 = inlined_call_operand.vmem [shape: f32[8], index: 0, kind: input, shape index: {}]
  %s1 = inlined_call_operand.vmem [shape: f32[16,8], index: 1, kind: output, shape index: {}]
  // Predicated region
  $region2: #{tile.13} parent=0 // pred_check
    _
  $region3: #{tile.13} parent=0 // pred_check_branch
    %3 = sbr.rel (0) target = $region5
  $region4: #{tile.13} parent=0 // pred_region
    _
  $region5: #{tile.13} parent=0 // pred_fallthru
    _
  %v4 = vld [vmem:[%s0] ss:$0 sm:$0xff]
  %5 = vst [vmem:[%s1] sm:$0xff] %v4
  %s6 = scalar_lea.vmem %s1, 8
  %7 = vst [vmem:[%s6] sm:$0xff] %v4

// kernel: tile.14
$region0: #{tile.14}
  %s0 = inlined_call_operand.vmem [shape: f32[16,8], index: 0, kind: input, shape index: {}]
  %s1 = inlined_call_operand.vmem [shape: f32[1,128], index: 1, kind: output, shape index: {}]
  $region1: #{tile.14} parent=0
    #allocation0 [shape = 'u8[4096]{0}', space=vmem, size = 0x1000, scoped, tag = 'scoped mem for output reshape']
    %v2 = vld [vmem:[%s0] sm:$0x1]
    %vm3 = vcmask 64512
    %4 = vst.msk [vmem:[#allocation0] sm:$0x1] %vm3, %v2
    %s5 = scalar_lea.vmem %s0, 15
    %v6 = vld [vmem:[%s5] sm:$0x1]
    %7 = vrot.lane.b32.xlu0 %v6, 120
    %v8 = vpop.permute.xlu0 %7
    %vm9 = vcmask 1048512
    %10 = vst.msk [vmem:[#allocation0] sm:$0x1] %vm9, %v8
    %s11 = scalar_lea.vmem %s0, 14
    %v12 = vld [vmem:[%s11] sm:$0x1]
    %13 = vrot.lane.b32.xlu0 %v12, 112
    %v14 = vpop.permute.xlu0 %13
    %vm15 = vcmask 982912
    %16 = vst.msk [vmem:[#allocation0] sm:$0x1] %vm15, %v14
    %s17 = scalar_lea.vmem %s0, 13
    %v18 = vld [vmem:[%s17] sm:$0x1]
    %19 = vrot.lane.b32.xlu0 %v18, 104
    %v20 = vpop.permute.xlu0 %19
    %vm21 = vcmask 917312
    %22 = vst.msk [vmem:[#allocation0] sm:$0x1] %vm21, %v20
    %s23 = scalar_lea.vmem %s0, 12
    %v24 = vld [vmem:[%s23] sm:$0x1]
    %25 = vrot.lane.b32.xlu0 %v24, 96
    %v26 = vpop.permute.xlu0 %25
    %vm27 = vcmask 851712
    %28 = vst.msk [vmem:[#allocation0] sm:$0x1] %vm27, %v26
    %s29 = scalar_lea.vmem %s0, 11
    %v30 = vld [vmem:[%s29] sm:$0x1]
    %31 = vrot.lane.b32.xlu0 %v30, 88
    %v32 = vpop.permute.xlu0 %31
    %vm33 = vcmask 786112
    %34 = vst.msk [vmem:[#allocation0] sm:$0x1] %vm33, %v32
    %s35 = scalar_lea.vmem %s0, 10
    %v36 = vld [vmem:[%s35] sm:$0x1]
    %37 = vrot.lane.b32.xlu0 %v36, 80
    %v38 = vpop.permute.xlu0 %37
    %vm39 = vcmask 720512
    %40 = vst.msk [vmem:[#allocation0] sm:$0x1] %vm39, %v38
    %s41 = scalar_lea.vmem %s0, 9
    %v42 = vld [vmem:[%s41] sm:$0x1]
    %43 = vrot.lane.b32.xlu0 %v42, 72
    %v44 = vpop.permute.xlu0 %43
    %vm45 = vcmask 654912
    %46 = vst.msk [vmem:[#allocation0] sm:$0x1] %vm45, %v44
    %s47 = scalar_lea.vmem %s0, 8
    %v48 = vld [vmem:[%s47] sm:$0x1]
    %49 = vrot.lane.b32.xlu0 %v48, 64
    %v50 = vpop.permute.xlu0 %49
    %vm51 = vcmask 589312
    %52 = vst.msk [vmem:[#allocation0] sm:$0x1] %vm51, %v50
    %s53 = scalar_lea.vmem %s0, 7
    %v54 = vld [vmem:[%s53] sm:$0x1]
    %55 = vrot.lane.b32.xlu0 %v54, 56
    %v56 = vpop.permute.xlu0 %55
    %vm57 = vcmask 523712
    %58 = vst.msk [vmem:[#allocation0] sm:$0x1] %vm57, %v56
    %s59 = scalar_lea.vmem %s0, 6
    %v60 = vld [vmem:[%s59] sm:$0x1]
    %61 = vrot.lane.b32.xlu0 %v60, 48
    %v62 = vpop.permute.xlu0 %61
    %vm63 = vcmask 458112
    %64 = vst.msk [vmem:[#allocation0] sm:$0x1] %vm63, %v62
    %s65 = scalar_lea.vmem %s0, 5
    %v66 = vld [vmem:[%s65] sm:$0x1]
    %67 = vrot.lane.b32.xlu0 %v66, 40
    %v68 = vpop.permute.xlu0 %67
    %vm69 = vcmask 392512
    %70 = vst.msk [vmem:[#allocation0] sm:$0x1] %vm69, %v68
    %s71 = scalar_lea.vmem %s0, 4
    %v72 = vld [vmem:[%s71] sm:$0x1]
    %73 = vrot.lane.b32.xlu0 %v72, 32
    %v74 = vpop.permute.xlu0 %73
    %vm75 = vcmask 326912
    %76 = vst.msk [vmem:[#allocation0] sm:$0x1] %vm75, %v74
    %s77 = scalar_lea.vmem %s0, 3
    %v78 = vld [vmem:[%s77] sm:$0x1]
    %79 = vrot.lane.b32.xlu0 %v78, 24
    %v80 = vpop.permute.xlu0 %79
    %vm81 = vcmask 261312
    %82 = vst.msk [vmem:[#allocation0] sm:$0x1] %vm81, %v80
    %s83 = scalar_lea.vmem %s0, 2
    %v84 = vld [vmem:[%s83] sm:$0x1]
    %85 = vrot.lane.b32.xlu0 %v84, 16
    %v86 = vpop.permute.xlu0 %85
    %vm87 = vcmask 195712
    %88 = vst.msk [vmem:[#allocation0] sm:$0x1] %vm87, %v86
    %s89 = scalar_lea.vmem %s0, 1
    %v90 = vld [vmem:[%s89] sm:$0x1]
    %91 = vrot.lane.b32.xlu0 %v90, 8
    %v92 = vpop.permute.xlu0 %91
    %vm93 = vcmask 130112
    %94 = vst.msk [vmem:[#allocation0] sm:$0x1] %vm93, %v92
    %s96 = sshllo.u32 0, 1
    %v98 = vld [vmem:[#allocation0] sm:%s96]
    %s99 = sshllo.u32 0, 1
    %100 = vst [vmem:[%s1] sm:%s99] %v98

// kernel: basic_block_forward.1
$region0: #{basic_block_forward.1}
  #allocation0 [shape = 'u32[]', space=smem, size = 0x4, offset = 0x4, fixed_abs, tag = 'smem constant byte address 0x4 - core index']
  #allocation1 [shape = 'u32[144,128]{1,0:T(1,128)}', space=vmem, size = 0x12000, scoped, tag = 'internal scratch']
  #allocation2 [shape = 'bf16[18,128]{1,0:T(8,128)(2,1)}', space=vmem, size = 0x1800, scoped, tag = 'scratch operand']
  %s0 = inlined_call_operand.vmem [shape: bf16[2,18,64], index: 0, kind: input, shape index: {}]
  %s1 = inlined_call_operand.vmem [shape: bf16[3,64,128], index: 1, kind: input, shape index: {}]
  %s2 = inlined_call_operand.vmem [shape: f32[1,128], index: 2, kind: input, shape index: {}]
  %s3 = inlined_call_operand.vmem [shape: bf16[3,128,128], index: 3, kind: input, shape index: {}]
  %s4 = inlined_call_operand.vmem [shape: f32[1,128], index: 4, kind: input, shape index: {}]
  %s5 = inlined_call_operand.vmem [shape: f32[2,128,64], index: 5, kind: input, shape index: {}]
  %s6 = inlined_call_operand.vmem [shape: f32[2,8,64], index: 6, kind: output, shape index: {}]
  %s7 = sld [smem:[#allocation0]]
  $region57: #{basic_block_forward.1} parent=0
    _
  %s9 = ssub.s32 1, %s7
  %s10 = scalar_select 0, %s9, %s7
  loop: start=0, step=1, limit=4
  $region2: #{basic_block_forward.1} parent=0 // loop_pre_header
    _
  $region3: #{basic_block_forward.1} parent=0 // loop_header
    %s12 = sphi 0, %s16
    %p13 = scmp.ge.s32.totalorder %s12, 4
    %s22 = sphi 0, %s24
    %s25 = sphi 0, %s22
    %s26 = sphi 0, %s25
    %s42 = sphi 0, %s26
    %s46 = sphi 0, %s46
    %s48 = sphi 0, %s46
    %s49 = sphi 0, %s48
    %s63 = sphi 0, %s49
    %s67 = sphi 0, %s67
    %s69 = sphi 0, %s67
    %s70 = sphi 0, %s69
    %s84 = sphi 0, %s70
    %s88 = sphi 0, %s88
    %s90 = sphi 0, %s88
    %s91 = sphi 0, %s90
    %s105 = sphi 0, %s91
    %s109 = sphi 0, %s109
    %s111 = sphi 0, %s109
    %s112 = sphi 0, %s111
    %s126 = sphi 0, %s112
    %s130 = sphi 0, %s130
    %s132 = sphi 0, %s130
    %s133 = sphi 0, %s132
    %s147 = sphi 0, %s133
    %s153 = sphi 0, %s155
    %s156 = sphi 0, %s153
    %s157 = sphi 0, %s156
    %s173 = sphi 0, %s157
  $region4: #{basic_block_forward.1} parent=0 // loop_header_branch
    %15 = sbr.rel (%p13) target = $region8
  $region5: #{basic_block_forward.1} parent=0 // loop_body
    %s17 = ssub.s32 %s12, 1
    %s18 = ssub.s32 %s12, 2
    %s19 = sadd.s32 %s12, 1
    %s20 = ssub.s32 %s12, %s19
    %p21 = scmp.eq.s32.totalorder %s20, 0
    %s23 = sadd.s32 %s22, 1
    %s24 = scalar_select %p21, %s22, %s23
    %p27 = pneg %p21
    %p28 = scmp.eq.s32.totalorder %s12, 1
    %p29 = por %p27, %p28
    %p30 = scmp.ne.s32.totalorder %s22, %s25
    %p31 = scmp.eq.s32.totalorder %s12, 0
    %p32 = por %p30, %p31
    %p33 = scmp.ne.s32.totalorder %s22, %s25
    %p34 = scmp.eq.s32.totalorder %s17, 1
    %p35 = por %p33, %p34
    %p36 = scmp.ne.s32.totalorder %s25, %s26
    %p37 = scmp.eq.s32.totalorder %s17, 0
    %p38 = por %p36, %p37
    %p39 = scmp.ne.s32.totalorder %s25, %s26
    %p40 = scmp.eq.s32.totalorder %s18, 1
    %p41 = por %p39, %p40
    %p43 = scmp.ne.s32.totalorder %s26, %s42
    %p44 = scmp.eq.s32.totalorder %s18, 0
    %p45 = por %p43, %p44
    %s47 = sadd.s32 %s46, 1
    %p50 = scmp.eq.s32.totalorder %s12, 1
    %p51 = scmp.ne.s32.totalorder %s46, %s48
    %p52 = scmp.eq.s32.totalorder %s12, 0
    %p53 = por %p51, %p52
    %p54 = scmp.ne.s32.totalorder %s46, %s48
    %p55 = scmp.eq.s32.totalorder %s17, 1
    %p56 = por %p54, %p55
    %p57 = scmp.ne.s32.totalorder %s48, %s49
    %p58 = scmp.eq.s32.totalorder %s17, 0
    %p59 = por %p57, %p58
    %p60 = scmp.ne.s32.totalorder %s48, %s49
    %p61 = scmp.eq.s32.totalorder %s18, 1
    %p62 = por %p60, %p61
    %p64 = scmp.ne.s32.totalorder %s49, %s63
    %p65 = scmp.eq.s32.totalorder %s18, 0
    %p66 = por %p64, %p65
    %s68 = sadd.s32 %s67, 1
    %p71 = scmp.eq.s32.totalorder %s12, 1
    %p72 = scmp.ne.s32.totalorder %s67, %s69
    %p73 = scmp.eq.s32.totalorder %s12, 0
    %p74 = por %p72, %p73
    %p75 = scmp.ne.s32.totalorder %s67, %s69
    %p76 = scmp.eq.s32.totalorder %s17, 1
    %p77 = por %p75, %p76
    %p78 = scmp.ne.s32.totalorder %s69, %s70
    %p79 = scmp.eq.s32.totalorder %s17, 0
    %p80 = por %p78, %p79
    %p81 = scmp.ne.s32.totalorder %s69, %s70
    %p82 = scmp.eq.s32.totalorder %s18, 1
    %p83 = por %p81, %p82
    %p85 = scmp.ne.s32.totalorder %s70, %s84
    %p86 = scmp.eq.s32.totalorder %s18, 0
    %p87 = por %p85, %p86
    %s89 = sadd.s32 %s88, 1
    %p92 = scmp.eq.s32.totalorder %s12, 1
    %p93 = scmp.ne.s32.totalorder %s88, %s90
    %p94 = scmp.eq.s32.totalorder %s12, 0
    %p95 = por %p93, %p94
    %p96 = scmp.ne.s32.totalorder %s88, %s90
    %p97 = scmp.eq.s32.totalorder %s17, 1
    %p98 = por %p96, %p97
    %p99 = scmp.ne.s32.totalorder %s90, %s91
    %p100 = scmp.eq.s32.totalorder %s17, 0
    %p101 = por %p99, %p100
    %p102 = scmp.ne.s32.totalorder %s90, %s91
    %p103 = scmp.eq.s32.totalorder %s18, 1
    %p104 = por %p102, %p103
    %p106 = scmp.ne.s32.totalorder %s91, %s105
    %p107 = scmp.eq.s32.totalorder %s18, 0
    %p108 = por %p106, %p107
    %s110 = sadd.s32 %s109, 1
    %p113 = scmp.eq.s32.totalorder %s12, 1
    %p114 = scmp.ne.s32.totalorder %s109, %s111
    %p115 = scmp.eq.s32.totalorder %s12, 0
    %p116 = por %p114, %p115
    %p117 = scmp.ne.s32.totalorder %s109, %s111
    %p118 = scmp.eq.s32.totalorder %s17, 1
    %p119 = por %p117, %p118
    %p120 = scmp.ne.s32.totalorder %s111, %s112
    %p121 = scmp.eq.s32.totalorder %s17, 0
    %p122 = por %p120, %p121
    %p123 = scmp.ne.s32.totalorder %s111, %s112
    %p124 = scmp.eq.s32.totalorder %s18, 1
    %p125 = por %p123, %p124
    %p127 = scmp.ne.s32.totalorder %s112, %s126
    %p128 = scmp.eq.s32.totalorder %s18, 0
    %p129 = por %p127, %p128
    %s131 = sadd.s32 %s130, 1
    %p134 = scmp.eq.s32.totalorder %s12, 1
    %p135 = scmp.ne.s32.totalorder %s130, %s132
    %p136 = scmp.eq.s32.totalorder %s12, 0
    %p137 = por %p135, %p136
    %p138 = scmp.ne.s32.totalorder %s130, %s132
    %p139 = scmp.eq.s32.totalorder %s17, 1
    %p140 = por %p138, %p139
    %p141 = scmp.ne.s32.totalorder %s132, %s133
    %p142 = scmp.eq.s32.totalorder %s17, 0
    %p143 = por %p141, %p142
    %p144 = scmp.ne.s32.totalorder %s132, %s133
    %p145 = scmp.eq.s32.totalorder %s18, 1
    %p146 = por %p144, %p145
    %p148 = scmp.ne.s32.totalorder %s133, %s147
    %p149 = scmp.eq.s32.totalorder %s18, 0
    %p150 = por %p148, %p149
    %s151 = ssub.s32 %s12, %s19
    %p152 = scmp.eq.s32.totalorder %s151, 0
    %s154 = sadd.s32 %s153, 1
    %s155 = scalar_select %p152, %s153, %s154
    %p158 = pneg %p152
    %p159 = scmp.eq.s32.totalorder %s12, 1
    %p160 = por %p158, %p159
    %p161 = scmp.ne.s32.totalorder %s153, %s156
    %p162 = scmp.eq.s32.totalorder %s12, 0
    %p163 = por %p161, %p162
    %p164 = scmp.ne.s32.totalorder %s153, %s156
    %p165 = scmp.eq.s32.totalorder %s17, 1
    %p166 = por %p164, %p165
    %p167 = scmp.ne.s32.totalorder %s156, %s157
    %p168 = scmp.eq.s32.totalorder %s17, 0
    %p169 = por %p167, %p168
    %p170 = scmp.ne.s32.totalorder %s156, %s157
    %p171 = scmp.eq.s32.totalorder %s18, 1
    %p172 = por %p170, %p171
    %p174 = scmp.ne.s32.totalorder %s157, %s173
    %p175 = scmp.eq.s32.totalorder %s18, 0
    %p176 = por %p174, %p175
    %p177 = scmp.le.s32.totalorder 1, %s12
    %p178 = scmp.lt.s32.totalorder %s12, 3
    %p179 = pnand %p177, %p178
    %p180 = pneg %p179
    // Predicated region
    $region9: #{basic_block_forward.1} parent=5 // pred_check
      _
    $region10: #{basic_block_forward.1} parent=5 // pred_check_branch
      %182 = sbr.rel (%p179) target = $region12
    $region11: #{basic_block_forward.1} parent=5 // pred_region
      %s183 = ssub.s32 %s12, 1
      // Predicated region
      $region13: #{basic_block_forward.1} parent=11 // pred_check
        %p184 = pneg %p59
      $region14: #{basic_block_forward.1} parent=11 // pred_check_branch
        %186 = sbr.rel (%p184) target = $region16
      $region15: #{basic_block_forward.1} parent=11 // pred_region
        _
      $region16: #{basic_block_forward.1} parent=11 // pred_fallthru
        _
      // Predicated region
      $region17: #{basic_block_forward.1} parent=11 // pred_check
        %p187 = pneg %p80
      $region18: #{basic_block_forward.1} parent=11 // pred_check_branch
        %189 = sbr.rel (%p187) target = $region20
      $region19: #{basic_block_forward.1} parent=11 // pred_region
        _
      $region20: #{basic_block_forward.1} parent=11 // pred_fallthru
        _
      // Predicated region
      $region21: #{basic_block_forward.1} parent=11 // pred_check
        %p190 = pneg %p101
      $region22: #{basic_block_forward.1} parent=11 // pred_check_branch
        %192 = sbr.rel (%p190) target = $region24
      $region23: #{basic_block_forward.1} parent=11 // pred_region
        _
      $region24: #{basic_block_forward.1} parent=11 // pred_fallthru
        _
      // Predicated region
      $region25: #{basic_block_forward.1} parent=11 // pred_check
        %p193 = pneg %p122
      $region26: #{basic_block_forward.1} parent=11 // pred_check_branch
        %195 = sbr.rel (%p193) target = $region28
      $region27: #{basic_block_forward.1} parent=11 // pred_region
        _
      $region28: #{basic_block_forward.1} parent=11 // pred_fallthru
        _
      // Predicated region
      $region29: #{basic_block_forward.1} parent=11 // pred_check
        %p196 = pneg %p143
      $region30: #{basic_block_forward.1} parent=11 // pred_check_branch
        %198 = sbr.rel (%p196) target = $region32
      $region31: #{basic_block_forward.1} parent=11 // pred_region
        _
      $region32: #{basic_block_forward.1} parent=11 // pred_fallthru
        _
    $region12: #{basic_block_forward.1} parent=5 // pred_fallthru
      _
    %p199 = scmp.lt.s32.totalorder %s12, 2
    // Predicated region
    $region33: #{basic_block_forward.1} parent=5 // pred_check
      %p200 = pneg %p199
    $region34: #{basic_block_forward.1} parent=5 // pred_check_branch
      %202 = sbr.rel (%p200) target = $region36
    $region35: #{basic_block_forward.1} parent=5 // pred_region
      // Predicated region
      $region37: #{basic_block_forward.1} parent=35 // pred_check
        %p203 = pneg %p32
      $region38: #{basic_block_forward.1} parent=35 // pred_check_branch
        %205 = sbr.rel (%p203) target = $region40
      $region39: #{basic_block_forward.1} parent=35 // pred_region
        %p206 = scmp.lt.s32.totalorder %s12, 1
        %s207 = scalar_select %p206, %s12, 1
        %s208 = smul.addr %s207, 3
        %s209 = smul.addr %s208, 4
        %s210 = scalar_lea.vmem %s0, %s209
      $region40: #{basic_block_forward.1} parent=35 // pred_fallthru
        _
    $region36: #{basic_block_forward.1} parent=5 // pred_fallthru
      _
    %p211 = scmp.le.s32.totalorder 1, %s12
    %p212 = scmp.lt.s32.totalorder %s12, 3
    %p213 = pnand %p211, %p212
    %p214 = pneg %p213
    // Predicated region
    $region41: #{basic_block_forward.1} parent=5 // pred_check
      _
    $region42: #{basic_block_forward.1} parent=5 // pred_check_branch
      %216 = sbr.rel (%p213) target = $region44
    $region43: #{basic_block_forward.1} parent=5 // pred_region
      %s217 = ssub.s32 %s12, 1
      %p218 = scmp.lt.s32.totalorder %s17, 1
      %s219 = scalar_select %p218, %s17, 1
      %s220 = smul.addr %s219, 3
      %s221 = smul.addr %s220, 4
      %s222 = scalar_lea.vmem %s0, %s221
      %p223 = pneg %p38
      %p224 = pneg %p35
      %p225 = pneg %p59
      %p226 = pneg %p56
      %p227 = pneg %p80
      %p228 = pneg %p77
      %p229 = pneg %p101
      %p230 = pneg %p98
      %p231 = pneg %p122
      %p232 = pneg %p119
      %p233 = pneg %p143
      %p234 = pneg %p140
      %p235 = pneg %p169
      %p236 = pneg %p166
      %p237 = scmp.lt.s32.totalorder %s17, 1
      %s238 = scalar_select %p237, %s17, 1
      %s239 = smul.addr %s238, 8
      %s240 = scalar_lea.vmem %s6, %s239
      %p241 = scmp.lt.s32.totalorder %s17, 1
      %s242 = scalar_select %p241, %s17, 1
      %s243 = smul.addr %s242, 3
      %s244 = smul.addr %s243, 4
      %s245 = scalar_lea.vmem %s0, %s244
      %p246 = scmp.lt.s32.totalorder %s17, 1
      %s247 = scalar_select %p246, %s17, 1
      %s248 = smul.addr %s247, 8
      %s249 = scalar_lea.vmem %s6, %s248
      %v251 = vld [vmem:[%s245] sm:$0xf]
      %v252 = vld [vmem:[%s245 + $0x4] sm:$0xf]
      %v253 = vld [vmem:[%s1] sm:$0xf]
      %v254 = vld [vmem:[%s1 + $0x4] sm:$0xf]
      %v255 = vld [vmem:[%s1 + $0x8] sm:$0xf]
      %v256 = vld [vmem:[%s1 + $0xc] sm:$0xf]
      %v257 = vld [vmem:[%s1 + $0x10] sm:$0xf]
      %v258 = vld [vmem:[%s1 + $0x14] sm:$0xf]
      %v259 = vld [vmem:[%s1 + $0x18] sm:$0xf]
      %v260 = vld [vmem:[%s1 + $0x1c] sm:$0xf]
      %v261 = vld [vmem:[%s245 + $0x8] sm:$0x1]
      %s262 = scalar_lea.vmem %s1, 32
      %v263 = vld [vmem:[%s262] sm:$0xf]
      %v264 = vld [vmem:[%s262 + $0x4] sm:$0xf]
      %v265 = vld [vmem:[%s262 + $0x8] sm:$0xf]
      %v266 = vld [vmem:[%s262 + $0xc] sm:$0xf]
      %v267 = vld [vmem:[%s262 + $0x10] sm:$0xf]
      %v268 = vld [vmem:[%s262 + $0x14] sm:$0xf]
      %v269 = vld [vmem:[%s262 + $0x18] sm:$0xf]
      %v270 = vld [vmem:[%s262 + $0x1c] sm:$0xf]
      %v274 = vunpack.c.l.b16 %v251
      %v275 = vunpack.c.l.b16 %v252
      %v276 = vunpack.c.l.b16 %v261
      %v277 = vpack.c.b16 %v275, %v274
      %v278 = vpack.c.b16 %v276, %v276
      %vm279 = vsmask.f32 7424
      %v281 = vshrl.u32 %v277, 16
      %v283 = vshll.u32 %v277, 16
      %v285 = vrot.slane %v283, 1
      %v286 = vor.u32 %v281, %v285
      %v288 = vshll.u32 %v278, 16
      %v290 = vrot.slane %v288, 1
      %v291 = vsel %vm279, %v286, %v290
      %v300 = vunpack.c.l.b16 %v263
      %v301 = vunpack.c.l.b16 %v264
      %v302 = vunpack.c.l.b16 %v265
      %v303 = vunpack.c.l.b16 %v266
      %v304 = vunpack.c.l.b16 %v267
      %v305 = vunpack.c.l.b16 %v268
      %v306 = vunpack.c.l.b16 %v269
      %v307 = vunpack.c.l.b16 %v270
      %v308 = vpack.c.b16 %v301, %v300
      %v309 = vpack.c.b16 %v303, %v302
      %v310 = vpack.c.b16 %v305, %v304
      %v311 = vpack.c.b16 %v307, %v306
      %vm316 = vcmask 523264
      %v318 = vsel %vm316, %v291, 0
      %320 = vmatprep.subr.bf16.mxu0 0
      %321 = vmatpush1.bf16.msra.mxu0 %v308
      %322 = vmatprep.subr.bf16.mxu0 0
      %323 = vmatpush1.bf16.msra.mxu0 %v309
      %324 = vmatprep.subr.bf16.mxu0 0
      %325 = vmatpush1.bf16.msra.mxu0 %v310
      %326 = vmatprep.subr.bf16.mxu0 0
      %327 = vmatpush1.bf16.msra.mxu0 %v311
      %328 = vmatprep.subr.bf16.mxu0 0
      %329 = vmatpush1.bf16.msra.mxu0 0
      %330 = vmatprep.subr.bf16.mxu0 0
      %331 = vmatpush1.bf16.msra.mxu0 0
      %332 = vmatprep.subr.bf16.mxu0 0
      %333 = vmatpush1.bf16.msra.mxu0 0
      %334 = vmatprep.subr.bf16.mxu0 0
      %335 = vmatpush1.bf16.msra.mxu0 0
      %336 = vmatprep.subr.bf16.mxu0 0
      %337 = vmatpush1.bf16.msra.mxu0 0
      %338 = vmatprep.subr.bf16.mxu0 0
      %339 = vmatpush1.bf16.msra.mxu0 0
      %340 = vmatprep.subr.bf16.mxu0 0
      %341 = vmatpush1.bf16.msra.mxu0 0
      %342 = vmatprep.subr.bf16.mxu0 0
      %343 = vmatpush1.bf16.msra.mxu0 0
      %344 = vmatprep.subr.bf16.mxu0 0
      %345 = vmatpush1.bf16.msra.mxu0 0
      %346 = vmatprep.subr.bf16.mxu0 0
      %347 = vmatpush1.bf16.msra.mxu0 0
      %348 = vmatprep.subr.bf16.mxu0 0
      %349 = vmatpush1.bf16.msra.mxu0 0
      %350 = vmatprep.subr.bf16.mxu0 0
      %351 = vmatpush1.bf16.msra.mxu0 0
      %352 = vmatprep.mubr.bf16.mxu0 0
      %353 = vmatmul.mubr.bf16.gmra.mrb[0].mxu0 %v318
      %v354 = vpop.f32.mrb[0].mxu0
      %v355 = vadd.f32 0.0, %v354
      %v356 = vpop.f32.mrb[0].mxu0
      %v357 = vpop.f32.mrb[0].mxu0
      %v358 = vadd.f32 0.0, %v357
      %v359 = vpop.f32.mrb[0].mxu0
      %360 = vdwg.mxu0
      %v369 = vunpack.c.l.b16 %v253
      %v370 = vunpack.c.l.b16 %v254
      %v371 = vunpack.c.l.b16 %v255
      %v372 = vunpack.c.l.b16 %v256
      %v373 = vunpack.c.l.b16 %v257
      %v374 = vunpack.c.l.b16 %v258
      %v375 = vunpack.c.l.b16 %v259
      %v376 = vunpack.c.l.b16 %v260
      %v377 = vpack.c.b16 %v370, %v369
      %v378 = vpack.c.b16 %v372, %v371
      %v379 = vpack.c.b16 %v374, %v373
      %v380 = vpack.c.b16 %v376, %v375
      %v385 = vsel %vm316, %v277, 0
      %387 = vmatprep.subr.bf16.mxu0 0
      %388 = vmatpush1.bf16.msra.mxu0 %v377
      %389 = vmatprep.subr.bf16.mxu0 0
      %390 = vmatpush1.bf16.msra.mxu0 %v378
      %391 = vmatprep.subr.bf16.mxu0 0
      %392 = vmatpush1.bf16.msra.mxu0 %v379
      %393 = vmatprep.subr.bf16.mxu0 0
      %394 = vmatpush1.bf16.msra.mxu0 %v380
      %395 = vmatprep.subr.bf16.mxu0 0
      %396 = vmatpush1.bf16.msra.mxu0 0
      %397 = vmatprep.subr.bf16.mxu0 0
      %398 = vmatpush1.bf16.msra.mxu0 0
      %399 = vmatprep.subr.bf16.mxu0 0
      %400 = vmatpush1.bf16.msra.mxu0 0
      %401 = vmatprep.subr.bf16.mxu0 0
      %402 = vmatpush1.bf16.msra.mxu0 0
      %403 = vmatprep.subr.bf16.mxu0 0
      %404 = vmatpush1.bf16.msra.mxu0 0
      %405 = vmatprep.subr.bf16.mxu0 0
      %406 = vmatpush1.bf16.msra.mxu0 0
      %407 = vmatprep.subr.bf16.mxu0 0
      %408 = vmatpush1.bf16.msra.mxu0 0
      %409 = vmatprep.subr.bf16.mxu0 0
      %410 = vmatpush1.bf16.msra.mxu0 0
      %411 = vmatprep.subr.bf16.mxu0 0
      %412 = vmatpush1.bf16.msra.mxu0 0
      %413 = vmatprep.subr.bf16.mxu0 0
      %414 = vmatpush1.bf16.msra.mxu0 0
      %415 = vmatprep.subr.bf16.mxu0 0
      %416 = vmatpush1.bf16.msra.mxu0 0
      %417 = vmatprep.subr.bf16.mxu0 0
      %418 = vmatpush1.bf16.msra.mxu0 0
      %419 = vmatprep.mubr.bf16.mxu0 0
      %420 = vmatmul.mubr.bf16.gmra.mrb[0].mxu0 %v385
      %v421 = vpop.f32.mrb[0].mxu0
      %v422 = vadd.f32 %v355, %v421
      %v423 = vpop.f32.mrb[0].mxu0
      %v424 = vpop.f32.mrb[0].mxu0
      %v425 = vadd.f32 %v358, %v424
      %v426 = vpop.f32.mrb[0].mxu0
      %427 = vdwg.mxu0
      %v428 = vld [vmem:[%s245] sm:$0xe]
      %s429 = scalar_lea.vmem %s1, 64
      %v430 = vld [vmem:[%s429] sm:$0xf]
      %v431 = vld [vmem:[%s429 + $0x4] sm:$0xf]
      %v432 = vld [vmem:[%s429 + $0x8] sm:$0xf]
      %v433 = vld [vmem:[%s429 + $0xc] sm:$0xf]
      %v434 = vld [vmem:[%s429 + $0x10] sm:$0xf]
      %v435 = vld [vmem:[%s429 + $0x14] sm:$0xf]
      %v436 = vld [vmem:[%s429 + $0x18] sm:$0xf]
      %v437 = vld [vmem:[%s429 + $0x1c] sm:$0xf]
      %v439 = vunpack.c.l.b16 %v428
      %v440 = vpack.c.b16 %v275, %v439
      %vm441 = vcmask 1046528
      %v442 = vrot.slane %v440, 1
      %v443 = vrot.slane %v278, 1
      %v444 = vsel %vm441, %v442, %v443
      %v453 = vunpack.c.l.b16 %v430
      %v454 = vunpack.c.l.b16 %v431
      %v455 = vunpack.c.l.b16 %v432
      %v456 = vunpack.c.l.b16 %v433
      %v457 = vunpack.c.l.b16 %v434
      %v458 = vunpack.c.l.b16 %v435
      %v459 = vunpack.c.l.b16 %v436
      %v460 = vunpack.c.l.b16 %v437
      %v461 = vpack.c.b16 %v454, %v453
      %v462 = vpack.c.b16 %v456, %v455
      %v463 = vpack.c.b16 %v458, %v457
      %v464 = vpack.c.b16 %v460, %v459
      %v470 = vsel %vm316, %v444, 0
      %472 = vmatprep.subr.bf16.mxu0 0
      %473 = vmatpush1.bf16.msra.mxu0 %v461
      %474 = vmatprep.subr.bf16.mxu0 0
      %475 = vmatpush1.bf16.msra.mxu0 %v462
      %476 = vmatprep.subr.bf16.mxu0 0
      %477 = vmatpush1.bf16.msra.mxu0 %v463
      %478 = vmatprep.subr.bf16.mxu0 0
      %479 = vmatpush1.bf16.msra.mxu0 %v464
      %480 = vmatprep.subr.bf16.mxu0 0
      %481 = vmatpush1.bf16.msra.mxu0 0
      %482 = vmatprep.subr.bf16.mxu0 0
      %483 = vmatpush1.bf16.msra.mxu0 0
      %484 = vmatprep.subr.bf16.mxu0 0
      %485 = vmatpush1.bf16.msra.mxu0 0
      %486 = vmatprep.subr.bf16.mxu0 0
      %487 = vmatpush1.bf16.msra.mxu0 0
      %488 = vmatprep.subr.bf16.mxu0 0
      %489 = vmatpush1.bf16.msra.mxu0 0
      %490 = vmatprep.subr.bf16.mxu0 0
      %491 = vmatpush1.bf16.msra.mxu0 0
      %492 = vmatprep.subr.bf16.mxu0 0
      %493 = vmatpush1.bf16.msra.mxu0 0
      %494 = vmatprep.subr.bf16.mxu0 0
      %495 = vmatpush1.bf16.msra.mxu0 0
      %496 = vmatprep.subr.bf16.mxu0 0
      %497 = vmatpush1.bf16.msra.mxu0 0
      %498 = vmatprep.subr.bf16.mxu0 0
      %499 = vmatpush1.bf16.msra.mxu0 0
      %500 = vmatprep.subr.bf16.mxu0 0
      %501 = vmatpush1.bf16.msra.mxu0 0
      %502 = vmatprep.subr.bf16.mxu0 0
      %503 = vmatpush1.bf16.msra.mxu0 0
      %504 = vmatprep.mubr.bf16.mxu0 0
      %505 = vmatmul.mubr.bf16.gmra.mrb[0].mxu0 %v470
      %v506 = vpop.f32.mrb[0].mxu0
      %v507 = vadd.f32 0.0, %v506
      %v508 = vpop.f32.mrb[0].mxu0
      %v509 = vpop.f32.mrb[0].mxu0
      %v510 = vadd.f32 0.0, %v509
      %v511 = vpop.f32.mrb[0].mxu0
      %512 = vdwg.mxu0
      %v513 = vadd.f32 %v422, %v507
      %v514 = vadd.f32 %v425, %v510
      %v515 = vld [vmem:[%s2] sm:$0x1]
      %v517 = vlaneseq
      %v518 = vshrl.u32 %v517, 7
      %v519 = vsub.s32 0, %v518
      %v520 = vrot.slane %v515, %v519
      %v522 = vadd.f32 %v513, %v520
      %v523 = vadd.f32 %v514, %v520
      %v524 = vmax.f32 %v522, 0.0
      %v525 = vmax.f32 %v523, 0.0
      %vm526 = vcmask 1040384
      %vm527 = vsmask.f32 256
      %vm528 = vmand %vm526, %vm527
      %v529 = vld [vmem:[#allocation2] sm:$0x1]
      %v530 = vsel %vm528, 0, %v529
      %531 = vst [vmem:[#allocation2] sm:$0x1] %v530
      %vm532 = vsmask.f32 7938
      %vm533 = vmand %vm526, %vm532
      %v534 = vld [vmem:[#allocation2 + $0x8] sm:$0x1]
      %v535 = vsel %vm533, 0, %v534
      %536 = vst [vmem:[#allocation2 + $0x8] sm:$0x1] %v535
      %v537 = vpack.c.bf16 %v525, %v524
      %v539 = vunpack.c.l.b16 %v537
      %v540 = vunpack.c.h.b16 %v537
      %v541 = vpack.c.b16 %v539, %v539
      %v542 = vpack.c.b16 %v540, %v540
      %vm543 = vsmask.f32 4368
      %vm544 = vmor %vm527, %vm543
      %v546 = vshrl.u32 %v541, 16
      %v548 = vrot.slane %v546, 7
      %v549 = vshll.u32 %v541, 16
      %v551 = vor.u32 %v548, %v549
      %v552 = vrot.slane %v548, 4
      %v554 = vshrl.u32 %v542, 16
      %v556 = vrot.slane %v554, 7
      %v557 = vshll.u32 %v542, 16
      %v559 = vor.u32 %v556, %v557
      %v560 = vsel %vm544, %v552, %v559
      %v561 = vrot.slane %v556, 4
      %vm565 = vcmask 1043456
      %vm566 = vmand %vm565, %vm532
      %v567 = vld [vmem:[#allocation2] sm:$0xf]
      %v568 = vsel %vm566, %v551, %v567
      %569 = vst [vmem:[#allocation2] sm:$0xf] %v568
      %570 = vst [vmem:[#allocation2 + $0x4] sm:$0xf] %v560
      %v571 = vld [vmem:[#allocation2 + $0x8] sm:$0x1]
      %v572 = vsel %vm528, %v561, %v571
      %573 = vst [vmem:[#allocation2 + $0x8] sm:$0x1] %v572
      %v574 = vld [vmem:[#allocation2] sm:$0xf]
      %v575 = vld [vmem:[#allocation2 + $0x4] sm:$0xf]
      %v576 = vld [vmem:[%s3] sm:$0xf]
      %v577 = vld [vmem:[%s3 + $0x4] sm:$0xf]
      %v578 = vld [vmem:[%s3 + $0x8] sm:$0xf]
      %v579 = vld [vmem:[%s3 + $0xc] sm:$0xf]
      %v580 = vld [vmem:[%s3 + $0x10] sm:$0xf]
      %v581 = vld [vmem:[%s3 + $0x14] sm:$0xf]
      %v582 = vld [vmem:[%s3 + $0x18] sm:$0xf]
      %v583 = vld [vmem:[%s3 + $0x1c] sm:$0xf]
      %v584 = vld [vmem:[%s3 + $0x20] sm:$0xf]
      %v585 = vld [vmem:[%s3 + $0x24] sm:$0xf]
      %v586 = vld [vmem:[%s3 + $0x28] sm:$0xf]
      %v587 = vld [vmem:[%s3 + $0x2c] sm:$0xf]
      %v588 = vld [vmem:[%s3 + $0x30] sm:$0xf]
      %v589 = vld [vmem:[%s3 + $0x34] sm:$0xf]
      %v590 = vld [vmem:[%s3 + $0x38] sm:$0xf]
      %v591 = vld [vmem:[%s3 + $0x3c] sm:$0xf]
      %v592 = vld [vmem:[#allocation2 + $0x8] sm:$0x1]
      %s593 = scalar_lea.vmem %s3, 64
      %v594 = vld [vmem:[%s593] sm:$0xf]
      %v595 = vld [vmem:[%s593 + $0x4] sm:$0xf]
      %v596 = vld [vmem:[%s593 + $0x8] sm:$0xf]
      %v597 = vld [vmem:[%s593 + $0xc] sm:$0xf]
      %v598 = vld [vmem:[%s593 + $0x10] sm:$0xf]
      %v599 = vld [vmem:[%s593 + $0x14] sm:$0xf]
      %v600 = vld [vmem:[%s593 + $0x18] sm:$0xf]
      %v601 = vld [vmem:[%s593 + $0x1c] sm:$0xf]
      %v602 = vld [vmem:[%s593 + $0x20] sm:$0xf]
      %v603 = vld [vmem:[%s593 + $0x24] sm:$0xf]
      %v604 = vld [vmem:[%s593 + $0x28] sm:$0xf]
      %v605 = vld [vmem:[%s593 + $0x2c] sm:$0xf]
      %v606 = vld [vmem:[%s593 + $0x30] sm:$0xf]
      %v607 = vld [vmem:[%s593 + $0x34] sm:$0xf]
      %v608 = vld [vmem:[%s593 + $0x38] sm:$0xf]
      %v609 = vld [vmem:[%s593 + $0x3c] sm:$0xf]
      %v613 = vunpack.c.l.b16 %v574
      %v614 = vunpack.c.l.b16 %v575
      %v615 = vunpack.c.l.b16 %v592
      %v616 = vpack.c.b16 %v614, %v613
      %v617 = vpack.c.b16 %v615, %v615
      %v619 = vshrl.u32 %v616, 16
      %v621 = vshll.u32 %v616, 16
      %v623 = vrot.slane %v621, 1
      %v624 = vor.u32 %v619, %v623
      %v626 = vshll.u32 %v617, 16
      %v628 = vrot.slane %v626, 1
      %v629 = vsel %vm279, %v624, %v628
      %v647 = vunpack.c.l.b16 %v594
      %v648 = vunpack.c.l.b16 %v595
      %v649 = vunpack.c.l.b16 %v596
      %v650 = vunpack.c.l.b16 %v597
      %v651 = vunpack.c.l.b16 %v598
      %v652 = vunpack.c.l.b16 %v599
      %v653 = vunpack.c.l.b16 %v600
      %v654 = vunpack.c.l.b16 %v601
      %v655 = vunpack.c.l.b16 %v602
      %v656 = vunpack.c.l.b16 %v603
      %v657 = vunpack.c.l.b16 %v604
      %v658 = vunpack.c.l.b16 %v605
      %v659 = vunpack.c.l.b16 %v606
      %v660 = vunpack.c.l.b16 %v607
      %v661 = vunpack.c.l.b16 %v608
      %v662 = vunpack.c.l.b16 %v609
      %v663 = vpack.c.b16 %v648, %v647
      %v664 = vpack.c.b16 %v650, %v649
      %v665 = vpack.c.b16 %v652, %v651
      %v666 = vpack.c.b16 %v654, %v653
      %v667 = vpack.c.b16 %v656, %v655
      %v668 = vpack.c.b16 %v658, %v657
      %v669 = vpack.c.b16 %v660, %v659
      %v670 = vpack.c.b16 %v662, %v661
      %679 = vmatprep.subr.bf16.mxu0 0
      %680 = vmatpush1.bf16.msra.mxu0 %v663
      %681 = vmatprep.subr.bf16.mxu0 0
      %682 = vmatpush1.bf16.msra.mxu0 %v664
      %683 = vmatprep.subr.bf16.mxu0 0
      %684 = vmatpush1.bf16.msra.mxu0 %v665
      %685 = vmatprep.subr.bf16.mxu0 0
      %686 = vmatpush1.bf16.msra.mxu0 %v666
      %687 = vmatprep.subr.bf16.mxu0 0
      %688 = vmatpush1.bf16.msra.mxu0 %v667
      %689 = vmatprep.subr.bf16.mxu0 0
      %690 = vmatpush1.bf16.msra.mxu0 %v668
      %691 = vmatprep.subr.bf16.mxu0 0
      %692 = vmatpush1.bf16.msra.mxu0 %v669
      %693 = vmatprep.subr.bf16.mxu0 0
      %694 = vmatpush1.bf16.msra.mxu0 %v670
      %695 = vmatprep.subr.bf16.mxu0 0
      %696 = vmatpush1.bf16.msra.mxu0 0
      %697 = vmatprep.subr.bf16.mxu0 0
      %698 = vmatpush1.bf16.msra.mxu0 0
      %699 = vmatprep.subr.bf16.mxu0 0
      %700 = vmatpush1.bf16.msra.mxu0 0
      %701 = vmatprep.subr.bf16.mxu0 0
      %702 = vmatpush1.bf16.msra.mxu0 0
      %703 = vmatprep.subr.bf16.mxu0 0
      %704 = vmatpush1.bf16.msra.mxu0 0
      %705 = vmatprep.subr.bf16.mxu0 0
      %706 = vmatpush1.bf16.msra.mxu0 0
      %707 = vmatprep.subr.bf16.mxu0 0
      %708 = vmatpush1.bf16.msra.mxu0 0
      %709 = vmatprep.subr.bf16.mxu0 0
      %710 = vmatpush1.bf16.msra.mxu0 0
      %711 = vmatprep.mubr.bf16.mxu0 0
      %712 = vmatmul.mubr.bf16.gmra.mrb[0].mxu0 %v629
      %v713 = vpop.f32.mrb[0].mxu0
      %v714 = vadd.f32 0.0, %v713
      %v715 = vpop.f32.mrb[0].mxu0
      %v716 = vpop.f32.mrb[0].mxu0
      %v717 = vadd.f32 0.0, %v716
      %v718 = vpop.f32.mrb[0].mxu0
      %719 = vdwg.mxu0
      %v737 = vunpack.c.l.b16 %v576
      %v738 = vunpack.c.l.b16 %v577
      %v739 = vunpack.c.l.b16 %v578
      %v740 = vunpack.c.l.b16 %v579
      %v741 = vunpack.c.l.b16 %v580
      %v742 = vunpack.c.l.b16 %v581
      %v743 = vunpack.c.l.b16 %v582
      %v744 = vunpack.c.l.b16 %v583
      %v745 = vunpack.c.l.b16 %v584
      %v746 = vunpack.c.l.b16 %v585
      %v747 = vunpack.c.l.b16 %v586
      %v748 = vunpack.c.l.b16 %v587
      %v749 = vunpack.c.l.b16 %v588
      %v750 = vunpack.c.l.b16 %v589
      %v751 = vunpack.c.l.b16 %v590
      %v752 = vunpack.c.l.b16 %v591
      %v753 = vpack.c.b16 %v738, %v737
      %v754 = vpack.c.b16 %v740, %v739
      %v755 = vpack.c.b16 %v742, %v741
      %v756 = vpack.c.b16 %v744, %v743
      %v757 = vpack.c.b16 %v746, %v745
      %v758 = vpack.c.b16 %v748, %v747
      %v759 = vpack.c.b16 %v750, %v749
      %v760 = vpack.c.b16 %v752, %v751
      %769 = vmatprep.subr.bf16.mxu0 0
      %770 = vmatpush1.bf16.msra.mxu0 %v753
      %771 = vmatprep.subr.bf16.mxu0 0
      %772 = vmatpush1.bf16.msra.mxu0 %v754
      %773 = vmatprep.subr.bf16.mxu0 0
      %774 = vmatpush1.bf16.msra.mxu0 %v755
      %775 = vmatprep.subr.bf16.mxu0 0
      %776 = vmatpush1.bf16.msra.mxu0 %v756
      %777 = vmatprep.subr.bf16.mxu0 0
      %778 = vmatpush1.bf16.msra.mxu0 %v757
      %779 = vmatprep.subr.bf16.mxu0 0
      %780 = vmatpush1.bf16.msra.mxu0 %v758
      %781 = vmatprep.subr.bf16.mxu0 0
      %782 = vmatpush1.bf16.msra.mxu0 %v759
      %783 = vmatprep.subr.bf16.mxu0 0
      %784 = vmatpush1.bf16.msra.mxu0 %v760
      %785 = vmatprep.subr.bf16.mxu0 0
      %786 = vmatpush1.bf16.msra.mxu0 0
      %787 = vmatprep.subr.bf16.mxu0 0
      %788 = vmatpush1.bf16.msra.mxu0 0
      %789 = vmatprep.subr.bf16.mxu0 0
      %790 = vmatpush1.bf16.msra.mxu0 0
      %791 = vmatprep.subr.bf16.mxu0 0
      %792 = vmatpush1.bf16.msra.mxu0 0
      %793 = vmatprep.subr.bf16.mxu0 0
      %794 = vmatpush1.bf16.msra.mxu0 0
      %795 = vmatprep.subr.bf16.mxu0 0
      %796 = vmatpush1.bf16.msra.mxu0 0
      %797 = vmatprep.subr.bf16.mxu0 0
      %798 = vmatpush1.bf16.msra.mxu0 0
      %799 = vmatprep.subr.bf16.mxu0 0
      %800 = vmatpush1.bf16.msra.mxu0 0
      %801 = vmatprep.mubr.bf16.mxu0 0
      %802 = vmatmul.mubr.bf16.gmra.mrb[0].mxu0 %v616
      %v803 = vpop.f32.mrb[0].mxu0
      %v804 = vadd.f32 %v714, %v803
      %v805 = vpop.f32.mrb[0].mxu0
      %v806 = vpop.f32.mrb[0].mxu0
      %v807 = vadd.f32 %v717, %v806
      %v808 = vpop.f32.mrb[0].mxu0
      %809 = vdwg.mxu0
      %v810 = vld [vmem:[#allocation2] sm:$0xe]
      %s811 = scalar_lea.vmem %s3, 128
      %v812 = vld [vmem:[%s811] sm:$0xf]
      %v813 = vld [vmem:[%s811 + $0x4] sm:$0xf]
      %v814 = vld [vmem:[%s811 + $0x8] sm:$0xf]
      %v815 = vld [vmem:[%s811 + $0xc] sm:$0xf]
      %v816 = vld [vmem:[%s811 + $0x10] sm:$0xf]
      %v817 = vld [vmem:[%s811 + $0x14] sm:$0xf]
      %v818 = vld [vmem:[%s811 + $0x18] sm:$0xf]
      %v819 = vld [vmem:[%s811 + $0x1c] sm:$0xf]
      %v820 = vld [vmem:[%s811 + $0x20] sm:$0xf]
      %v821 = vld [vmem:[%s811 + $0x24] sm:$0xf]
      %v822 = vld [vmem:[%s811 + $0x28] sm:$0xf]
      %v823 = vld [vmem:[%s811 + $0x2c] sm:$0xf]
      %v824 = vld [vmem:[%s811 + $0x30] sm:$0xf]
      %v825 = vld [vmem:[%s811 + $0x34] sm:$0xf]
      %v826 = vld [vmem:[%s811 + $0x38] sm:$0xf]
      %v827 = vld [vmem:[%s811 + $0x3c] sm:$0xf]
      %v829 = vunpack.c.l.b16 %v810
      %v830 = vpack.c.b16 %v614, %v829
      %v831 = vrot.slane %v830, 1
      %v832 = vrot.slane %v617, 1
      %v833 = vsel %vm441, %v831, %v832
      %v851 = vunpack.c.l.b16 %v812
      %v852 = vunpack.c.l.b16 %v813
      %v853 = vunpack.c.l.b16 %v814
      %v854 = vunpack.c.l.b16 %v815
      %v855 = vunpack.c.l.b16 %v816
      %v856 = vunpack.c.l.b16 %v817
      %v857 = vunpack.c.l.b16 %v818
      %v858 = vunpack.c.l.b16 %v819
      %v859 = vunpack.c.l.b16 %v820
      %v860 = vunpack.c.l.b16 %v821
      %v861 = vunpack.c.l.b16 %v822
      %v862 = vunpack.c.l.b16 %v823
      %v863 = vunpack.c.l.b16 %v824
      %v864 = vunpack.c.l.b16 %v825
      %v865 = vunpack.c.l.b16 %v826
      %v866 = vunpack.c.l.b16 %v827
      %v867 = vpack.c.b16 %v852, %v851
      %v868 = vpack.c.b16 %v854, %v853
      %v869 = vpack.c.b16 %v856, %v855
      %v870 = vpack.c.b16 %v858, %v857
      %v871 = vpack.c.b16 %v860, %v859
      %v872 = vpack.c.b16 %v862, %v861
      %v873 = vpack.c.b16 %v864, %v863
      %v874 = vpack.c.b16 %v866, %v865
      %883 = vmatprep.subr.bf16.mxu0 0
      %884 = vmatpush1.bf16.msra.mxu0 %v867
      %885 = vmatprep.subr.bf16.mxu0 0
      %886 = vmatpush1.bf16.msra.mxu0 %v868
      %887 = vmatprep.subr.bf16.mxu0 0
      %888 = vmatpush1.bf16.msra.mxu0 %v869
      %889 = vmatprep.subr.bf16.mxu0 0
      %890 = vmatpush1.bf16.msra.mxu0 %v870
      %891 = vmatprep.subr.bf16.mxu0 0
      %892 = vmatpush1.bf16.msra.mxu0 %v871
      %893 = vmatprep.subr.bf16.mxu0 0
      %894 = vmatpush1.bf16.msra.mxu0 %v872
      %895 = vmatprep.subr.bf16.mxu0 0
      %896 = vmatpush1.bf16.msra.mxu0 %v873
      %897 = vmatprep.subr.bf16.mxu0 0
      %898 = vmatpush1.bf16.msra.mxu0 %v874
      %899 = vmatprep.subr.bf16.mxu0 0
      %900 = vmatpush1.bf16.msra.mxu0 0
      %901 = vmatprep.subr.bf16.mxu0 0
      %902 = vmatpush1.bf16.msra.mxu0 0
      %903 = vmatprep.subr.bf16.mxu0 0
      %904 = vmatpush1.bf16.msra.mxu0 0
      %905 = vmatprep.subr.bf16.mxu0 0
      %906 = vmatpush1.bf16.msra.mxu0 0
      %907 = vmatprep.subr.bf16.mxu0 0
      %908 = vmatpush1.bf16.msra.mxu0 0
      %909 = vmatprep.subr.bf16.mxu0 0
      %910 = vmatpush1.bf16.msra.mxu0 0
      %911 = vmatprep.subr.bf16.mxu0 0
      %912 = vmatpush1.bf16.msra.mxu0 0
      %913 = vmatprep.subr.bf16.mxu0 0
      %914 = vmatpush1.bf16.msra.mxu0 0
      %915 = vmatprep.mubr.bf16.mxu0 0
      %916 = vmatmul.mubr.bf16.gmra.mrb[0].mxu0 %v833
      %v917 = vpop.f32.mrb[0].mxu0
      %v918 = vadd.f32 0.0, %v917
      %v919 = vpop.f32.mrb[0].mxu0
      %v920 = vpop.f32.mrb[0].mxu0
      %v921 = vadd.f32 0.0, %v920
      %v922 = vpop.f32.mrb[0].mxu0
      %923 = vdwg.mxu0
      %v924 = vadd.f32 %v804, %v918
      %v925 = vadd.f32 %v807, %v921
      %v926 = vld [vmem:[%s4] sm:$0x1]
      %v928 = vlaneseq
      %v929 = vshrl.u32 %v928, 7
      %v930 = vsub.s32 0, %v929
      %v931 = vrot.slane %v926, %v930
      %v933 = vadd.f32 %v924, %v931
      %v934 = vadd.f32 %v925, %v931
      %v935 = vmax.f32 %v933, 0.0
      %v936 = vmax.f32 %v934, 0.0
      %v939 = vcombine.high %v935, %v935
      %v941 = vunpack.c.l.s4 1983009808
      %v942 = vunpack.c.0.s8 %v941
      %v943 = vlaneseq
      %v944 = vshrl.u32 %v943, 7
      %v945 = vsub.s32 %v942, %v944
      %v946 = vrot.slane %v935, %v945
      %v948 = vunpack.c.l.s4 1983009808
      %v949 = vunpack.c.0.s8 %v948
      %v950 = vlaneseq
      %v951 = vshrl.u32 %v950, 7
      %v952 = vsub.s32 %v949, %v951
      %v953 = vrot.slane %v939, %v952
      %v954 = vcombine.high %v946, %v946
      %v955 = vcombine.high %v953, %v953
      %v956 = vcombine.high %v936, %v936
      %v958 = vunpack.c.l.s4 1983009808
      %v959 = vunpack.c.0.s8 %v958
      %v960 = vlaneseq
      %v961 = vshrl.u32 %v960, 7
      %v962 = vsub.s32 %v959, %v961
      %v963 = vrot.slane %v936, %v962
      %v965 = vunpack.c.l.s4 1983009808
      %v966 = vunpack.c.0.s8 %v965
      %v967 = vlaneseq
      %v968 = vshrl.u32 %v967, 7
      %v969 = vsub.s32 %v966, %v968
      %v970 = vrot.slane %v956, %v969
      %v971 = vcombine.high %v963, %v963
      %v972 = vcombine.high %v970, %v970
      %v981 = vrot.slane %v946, 7
      %v982 = vrot.slane %v981, 2
      %v983 = vrot.slane %v954, 7
      %v984 = vrot.slane %v983, 2
      %v985 = vrot.slane %v953, 7
      %v986 = vrot.slane %v985, 2
      %v987 = vrot.slane %v955, 7
      %v988 = vrot.slane %v987, 2
      %v989 = vrot.slane %v963, 7
      %v990 = vrot.slane %v989, 2
      %v991 = vrot.slane %v971, 7
      %v992 = vrot.slane %v991, 2
      %v993 = vrot.slane %v970, 7
      %v994 = vrot.slane %v993, 2
      %v995 = vrot.slane %v972, 7
      %v996 = vrot.slane %v995, 2
      %v1005 = vmax.f32 %v946, %v982
      %v1006 = vmax.f32 %v954, %v984
      %v1007 = vmax.f32 %v953, %v986
      %v1008 = vmax.f32 %v955, %v988
      %v1009 = vmax.f32 %v963, %v990
      %v1010 = vmax.f32 %v971, %v992
      %v1011 = vmax.f32 %v970, %v994
      %v1012 = vmax.f32 %v972, %v996
      %v1013 = vld [vmem:[%s5] sm:$0xff]
      %v1014 = vld [vmem:[%s5 + $0x8] sm:$0xff]
      %v1015 = vld [vmem:[%s5 + $0x10] sm:$0xff]
      %v1016 = vld [vmem:[%s5 + $0x18] sm:$0xff]
      %v1017 = vld [vmem:[%s5 + $0x20] sm:$0xff]
      %v1018 = vld [vmem:[%s5 + $0x28] sm:$0xff]
      %v1019 = vld [vmem:[%s5 + $0x30] sm:$0xff]
      %v1020 = vld [vmem:[%s5 + $0x38] sm:$0xff]
      %v1021 = vld [vmem:[%s5 + $0x40] sm:$0xff]
      %v1022 = vld [vmem:[%s5 + $0x48] sm:$0xff]
      %v1023 = vld [vmem:[%s5 + $0x50] sm:$0xff]
      %v1024 = vld [vmem:[%s5 + $0x58] sm:$0xff]
      %v1025 = vld [vmem:[%s5 + $0x60] sm:$0xff]
      %v1026 = vld [vmem:[%s5 + $0x68] sm:$0xff]
      %v1027 = vld [vmem:[%s5 + $0x70] sm:$0xff]
      %v1028 = vld [vmem:[%s5 + $0x78] sm:$0xff]
      %v1037 = vlaneseq
      %v1038 = vshrl.u32 %v1037, 7
      %v1039 = vsub.s32 0, %v1038
      %v1040 = vrot.slane %v1005, %v1039
      %v1041 = vlaneseq
      %v1042 = vshrl.u32 %v1041, 7
      %v1043 = vsub.s32 0, %v1042
      %v1044 = vrot.slane %v1006, %v1043
      %v1045 = vlaneseq
      %v1046 = vshrl.u32 %v1045, 7
      %v1047 = vsub.s32 0, %v1046
      %v1048 = vrot.slane %v1007, %v1047
      %v1049 = vlaneseq
      %v1050 = vshrl.u32 %v1049, 7
      %v1051 = vsub.s32 0, %v1050
      %v1052 = vrot.slane %v1008, %v1051
      %v1053 = vlaneseq
      %v1054 = vshrl.u32 %v1053, 7
      %v1055 = vsub.s32 0, %v1054
      %v1056 = vrot.slane %v1009, %v1055
      %v1057 = vlaneseq
      %v1058 = vshrl.u32 %v1057, 7
      %v1059 = vsub.s32 0, %v1058
      %v1060 = vrot.slane %v1010, %v1059
      %v1061 = vlaneseq
      %v1062 = vshrl.u32 %v1061, 7
      %v1063 = vsub.s32 0, %v1062
      %v1064 = vrot.slane %v1011, %v1063
      %v1065 = vlaneseq
      %v1066 = vshrl.u32 %v1065, 7
      %v1067 = vsub.s32 0, %v1066
      %v1068 = vrot.slane %v1012, %v1067
      %vm1069 = vcmask 1041409
      %v1070 = vsel %vm1069, %v1044, %v1040
      %vm1071 = vcmask 1042434
      %v1072 = vsel %vm1071, %v1048, %v1070
      %vm1073 = vcmask 1043459
      %v1074 = vsel %vm1073, %v1052, %v1072
      %vm1075 = vcmask 1044484
      %v1076 = vsel %vm1075, %v1056, %v1074
      %vm1077 = vcmask 1045509
      %v1078 = vsel %vm1077, %v1060, %v1076
      %vm1079 = vcmask 1046534
      %v1080 = vsel %vm1079, %v1064, %v1078
      %vm1081 = vcmask 1047559
      %v1082 = vsel %vm1081, %v1068, %v1080
      %1084 = vmatprep.subr.mxu0 0.0
      %1085 = vmatpush1.msra.mxu0 %v1013
      %1086 = vmatprep.subr.mxu0 0.0
      %1087 = vmatpush1.msra.mxu0 %v1014
      %1088 = vmatprep.subr.mxu0 0.0
      %1089 = vmatpush1.msra.mxu0 %v1015
      %1090 = vmatprep.subr.mxu0 0.0
      %1091 = vmatpush1.msra.mxu0 %v1016
      %1092 = vmatprep.subr.mxu0 0.0
      %1093 = vmatpush1.msra.mxu0 %v1017
      %1094 = vmatprep.subr.mxu0 0.0
      %1095 = vmatpush1.msra.mxu0 %v1018
      %1096 = vmatprep.subr.mxu0 0.0
      %1097 = vmatpush1.msra.mxu0 %v1019
      %1098 = vmatprep.subr.mxu0 0.0
      %1099 = vmatpush1.msra.mxu0 %v1020
      %1100 = vmatprep.subr.mxu0 0.0
      %1101 = vmatpush1.msra.mxu0 %v1021
      %1102 = vmatprep.subr.mxu0 0.0
      %1103 = vmatpush1.msra.mxu0 %v1022
      %1104 = vmatprep.subr.mxu0 0.0
      %1105 = vmatpush1.msra.mxu0 %v1023
      %1106 = vmatprep.subr.mxu0 0.0
      %1107 = vmatpush1.msra.mxu0 %v1024
      %1108 = vmatprep.subr.mxu0 0.0
      %1109 = vmatpush1.msra.mxu0 %v1025
      %1110 = vmatprep.subr.mxu0 0.0
      %1111 = vmatpush1.msra.mxu0 %v1026
      %1112 = vmatprep.subr.mxu0 0.0
      %1113 = vmatpush1.msra.mxu0 %v1027
      %1114 = vmatprep.subr.mxu0 0.0
      %1115 = vmatpush1.msra.mxu0 %v1028
      %1116 = vmatprep.subr.mxu0 0.0
      %1117 = vmatpush1.msra.mxu0 0.0
      %1118 = vmatprep.subr.mxu0 0.0
      %1119 = vmatpush1.msra.mxu0 0.0
      %1120 = vmatprep.subr.mxu0 0.0
      %1121 = vmatpush1.msra.mxu0 0.0
      %1122 = vmatprep.subr.mxu0 0.0
      %1123 = vmatpush1.msra.mxu0 0.0
      %1124 = vmatprep.subr.mxu0 0.0
      %1125 = vmatpush1.msra.mxu0 0.0
      %1126 = vmatprep.subr.mxu0 0.0
      %1127 = vmatpush1.msra.mxu0 0.0
      %1128 = vmatprep.subr.mxu0 0.0
      %1129 = vmatpush1.msra.mxu0 0.0
      %1130 = vmatprep.subr.mxu0 0.0
      %1131 = vmatpush1.msra.mxu0 0.0
      %1132 = vmatprep.subr.mxu0 0.0
      %1133 = vmatpush1.msra.mxu0 0.0
      %1134 = vmatprep.subr.mxu0 0.0
      %1135 = vmatpush1.msra.mxu0 0.0
      %1136 = vmatprep.subr.mxu0 0.0
      %1137 = vmatpush1.msra.mxu0 0.0
      %1138 = vmatprep.subr.mxu0 0.0
      %1139 = vmatpush1.msra.mxu0 0.0
      %1140 = vmatprep.subr.mxu0 0.0
      %1141 = vmatpush1.msra.mxu0 0.0
      %1142 = vmatprep.subr.mxu0 0.0
      %1143 = vmatpush1.msra.mxu0 0.0
      %1144 = vmatprep.subr.mxu0 0.0
      %1145 = vmatpush1.msra.mxu0 0.0
      %1146 = vmatprep.subr.mxu0 0.0
      %1147 = vmatpush1.msra.mxu0 0.0
      %1148 = vmatprep.mubr.f32.mxu0 0.0
      %1149 = vmatmul.mubr.f32.gmra.mrb[0].mxu0 %v1082
      %v1150 = vpop.f32.mrb[0].mxu0
      %v1151 = vadd.f32 0.0, %v1150
      %v1152 = vpop.f32.mrb[0].mxu0
      %1153 = vdwg.mxu0
      %s1154 = scalar_lea.vmem %s5, 128
      %v1155 = vld [vmem:[%s1154] sm:$0xff]
      %v1156 = vld [vmem:[%s1154 + $0x8] sm:$0xff]
      %v1157 = vld [vmem:[%s1154 + $0x10] sm:$0xff]
      %v1158 = vld [vmem:[%s1154 + $0x18] sm:$0xff]
      %v1159 = vld [vmem:[%s1154 + $0x20] sm:$0xff]
      %v1160 = vld [vmem:[%s1154 + $0x28] sm:$0xff]
      %v1161 = vld [vmem:[%s1154 + $0x30] sm:$0xff]
      %v1162 = vld [vmem:[%s1154 + $0x38] sm:$0xff]
      %v1163 = vld [vmem:[%s1154 + $0x40] sm:$0xff]
      %v1164 = vld [vmem:[%s1154 + $0x48] sm:$0xff]
      %v1165 = vld [vmem:[%s1154 + $0x50] sm:$0xff]
      %v1166 = vld [vmem:[%s1154 + $0x58] sm:$0xff]
      %v1167 = vld [vmem:[%s1154 + $0x60] sm:$0xff]
      %v1168 = vld [vmem:[%s1154 + $0x68] sm:$0xff]
      %v1169 = vld [vmem:[%s1154 + $0x70] sm:$0xff]
      %v1170 = vld [vmem:[%s1154 + $0x78] sm:$0xff]
      %1171 = vmatprep.subr.mxu0 0.0
      %1172 = vmatpush1.msra.mxu0 %v1155
      %1173 = vmatprep.subr.mxu0 0.0
      %1174 = vmatpush1.msra.mxu0 %v1156
      %1175 = vmatprep.subr.mxu0 0.0
      %1176 = vmatpush1.msra.mxu0 %v1157
      %1177 = vmatprep.subr.mxu0 0.0
      %1178 = vmatpush1.msra.mxu0 %v1158
      %1179 = vmatprep.subr.mxu0 0.0
      %1180 = vmatpush1.msra.mxu0 %v1159
      %1181 = vmatprep.subr.mxu0 0.0
      %1182 = vmatpush1.msra.mxu0 %v1160
      %1183 = vmatprep.subr.mxu0 0.0
      %1184 = vmatpush1.msra.mxu0 %v1161
      %1185 = vmatprep.subr.mxu0 0.0
      %1186 = vmatpush1.msra.mxu0 %v1162
      %1187 = vmatprep.subr.mxu0 0.0
      %1188 = vmatpush1.msra.mxu0 %v1163
      %1189 = vmatprep.subr.mxu0 0.0
      %1190 = vmatpush1.msra.mxu0 %v1164
      %1191 = vmatprep.subr.mxu0 0.0
      %1192 = vmatpush1.msra.mxu0 %v1165
      %1193 = vmatprep.subr.mxu0 0.0
      %1194 = vmatpush1.msra.mxu0 %v1166
      %1195 = vmatprep.subr.mxu0 0.0
      %1196 = vmatpush1.msra.mxu0 %v1167
      %1197 = vmatprep.subr.mxu0 0.0
      %1198 = vmatpush1.msra.mxu0 %v1168
      %1199 = vmatprep.subr.mxu0 0.0
      %1200 = vmatpush1.msra.mxu0 %v1169
      %1201 = vmatprep.subr.mxu0 0.0
      %1202 = vmatpush1.msra.mxu0 %v1170
      %1203 = vmatprep.subr.mxu0 0.0
      %1204 = vmatpush1.msra.mxu0 0.0
      %1205 = vmatprep.subr.mxu0 0.0
      %1206 = vmatpush1.msra.mxu0 0.0
      %1207 = vmatprep.subr.mxu0 0.0
      %1208 = vmatpush1.msra.mxu0 0.0
      %1209 = vmatprep.subr.mxu0 0.0
      %1210 = vmatpush1.msra.mxu0 0.0
      %1211 = vmatprep.subr.mxu0 0.0
      %1212 = vmatpush1.msra.mxu0 0.0
      %1213 = vmatprep.subr.mxu0 0.0
      %1214 = vmatpush1.msra.mxu0 0.0
      %1215 = vmatprep.subr.mxu0 0.0
      %1216 = vmatpush1.msra.mxu0 0.0
      %1217 = vmatprep.subr.mxu0 0.0
      %1218 = vmatpush1.msra.mxu0 0.0
      %1219 = vmatprep.subr.mxu0 0.0
      %1220 = vmatpush1.msra.mxu0 0.0
      %1221 = vmatprep.subr.mxu0 0.0
      %1222 = vmatpush1.msra.mxu0 0.0
      %1223 = vmatprep.subr.mxu0 0.0
      %1224 = vmatpush1.msra.mxu0 0.0
      %1225 = vmatprep.subr.mxu0 0.0
      %1226 = vmatpush1.msra.mxu0 0.0
      %1227 = vmatprep.subr.mxu0 0.0
      %1228 = vmatpush1.msra.mxu0 0.0
      %1229 = vmatprep.subr.mxu0 0.0
      %1230 = vmatpush1.msra.mxu0 0.0
      %1231 = vmatprep.subr.mxu0 0.0
      %1232 = vmatpush1.msra.mxu0 0.0
      %1233 = vmatprep.subr.mxu0 0.0
      %1234 = vmatpush1.msra.mxu0 0.0
      %1235 = vmatprep.mubr.f32.mxu0 0.0
      %1236 = vmatmul.mubr.f32.gmra.mrb[0].mxu0 %v1082
      %v1237 = vpop.f32.mrb[0].mxu0
      %v1238 = vadd.f32 0.0, %v1237
      %v1239 = vpop.f32.mrb[0].mxu0
      %1240 = vdwg.mxu0
      %v1241 = vmax.f32 %v1151, %v1238
      %1242 = vst.msk [vmem:[%s249] sm:$0xff] %vm316, %v1241
      %p1243 = scmp.lt.s32.totalorder %s17, 1
      %s1244 = scalar_select %p1243, %s17, 1
      %s1245 = smul.addr %s1244, 8
      %s1246 = scalar_lea.vmem %s6, %s1245
      // Predicated region
      $region45: #{basic_block_forward.1} parent=43 // pred_check
        %p1247 = pneg %p166
      $region46: #{basic_block_forward.1} parent=43 // pred_check_branch
        %1249 = sbr.rel (%p1247) target = $region48
      $region47: #{basic_block_forward.1} parent=43 // pred_region
        _
      $region48: #{basic_block_forward.1} parent=43 // pred_fallthru
        _
    $region44: #{basic_block_forward.1} parent=5 // pred_fallthru
      _
    %p1250 = scmp.le.s32.totalorder 2, %s12
    // Predicated region
    $region49: #{basic_block_forward.1} parent=5 // pred_check
      %p1251 = pneg %p1250
    $region50: #{basic_block_forward.1} parent=5 // pred_check_branch
      %1253 = sbr.rel (%p1251) target = $region52
    $region51: #{basic_block_forward.1} parent=5 // pred_region
      %s1254 = ssub.s32 %s12, 2
      // Predicated region
      $region53: #{basic_block_forward.1} parent=51 // pred_check
        %p1255 = pneg %p172
      $region54: #{basic_block_forward.1} parent=51 // pred_check_branch
        %1257 = sbr.rel (%p1255) target = $region56
      $region55: #{basic_block_forward.1} parent=51 // pred_region
        %p1258 = scmp.lt.s32.totalorder %s18, 1
        %s1259 = scalar_select %p1258, %s18, 1
        %s1260 = smul.addr %s1259, 8
        %s1261 = scalar_lea.vmem %s6, %s1260
      $region56: #{basic_block_forward.1} parent=51 // pred_fallthru
        _
    $region52: #{basic_block_forward.1} parent=5 // pred_fallthru
      _
  $region6: #{basic_block_forward.1} parent=0 // loop_footer
    %s16 = sadd.s32 1, %s12
  $region7: #{basic_block_forward.1} parent=0 // loop_footer_branch
    %11 = sbr.rel target = $region3
  $region8: #{basic_block_forward.1} parent=0 // loop_exit
    _

</llo_original>
